<compile_context>
chip_gen: v5e
topology: v5e:2x2
jax: 0.10.0
libtpu: 0.0.40
codegen_flags: <defaults>
</compile_context>

<pallas_src>
import numpy as np
import jax
import jax.numpy as jnp
from jax.experimental import pallas as pl
from jax.experimental.pallas import tpu as pltpu


# ------------------------------- config ------------------------------------

CFG = dict(vocab=100, hidden=32, n_layers=2, n_heads=2,
           intermediate=64, max_pos=64,
           num_ner_tags=3, num_cls_labels=2,
           head_pad=128)          # lane-dense fused classifier output width


# ----------------------------- shared helpers -------------------------------

def _layer_norm(x, g, b, eps=1e-12):
    mean = jnp.mean(x, axis=-1, keepdims=True)
    var = jnp.mean(jnp.square(x - mean), axis=-1, keepdims=True)
    return (x - mean) * jax.lax.rsqrt(var + eps) * g + b


# ------------------------------- kernel -------------------------------------

def make_encoder_kernel(S, H, Hh, Dh, L, scale):
    """One transformer layer per inner grid step; per-batch-tile activation
    resident in VMEM scratch; classifier heads fused into the last step."""

    def kernel(x_ref, bias_ref, sel_ref,
               wqkv_ref, bqkv_ref, wo_ref, bo_ref,
               ln1g_ref, ln1b_ref, w1_ref, b1_ref,
               w2_ref, b2_ref, ln2g_ref, ln2b_ref,
               head_w_ref, head_b_ref,
               out_ref, act_ref):
        l = pl.program_id(1)

        # seed the resident activation for this batch tile at layer 0
        @pl.when(l == 0)
        def _():
            act_ref[...] = x_ref[...]

        x = act_ref[...]                                    # [S, H] f32
        bias = bias_ref[...]                                # [1, 1, S] additive mask

        # ------------- self-attention: fused QKV, heads batched --------------
        qkv = (jnp.dot(x.astype(jnp.bfloat16), wqkv_ref[0],
                       preferred_element_type=jnp.float32) + bqkv_ref[0])   # [S, 3H]
        # single reshape + transpose: [S, 3H] -> [3*Hh, S, Dh]
        qkv_h = jnp.swapaxes(qkv.reshape(S, 3 * Hh, Dh), 0, 1).astype(jnp.bfloat16)
        q16 = qkv_h[:Hh]                                    # [Hh, S, Dh]
        k16 = qkv_h[Hh:2 * Hh]
        v16 = qkv_h[2 * Hh:]

        s = (jnp.einsum('hqd,hkd->hqk', q16, k16,
                        preferred_element_type=jnp.float32) * scale + bias)  # [Hh,S,S]
        m = jnp.max(s, axis=-1, keepdims=True)
        p = jnp.exp(s - m)
        p = p * pl.reciprocal(jnp.sum(p, axis=-1, keepdims=True), approx=True)

        ctx = jnp.einsum('hqk,hkd->hqd', p.astype(jnp.bfloat16), v16,
                         preferred_element_type=jnp.float32)                 # [Hh,S,Dh]
        ctx = jnp.swapaxes(ctx, 0, 1).reshape(S, H)          # merge heads
        attn = (jnp.dot(ctx.astype(jnp.bfloat16), wo_ref[0],
                        preferred_element_type=jnp.float32) + bo_ref[0])

        x = _layer_norm(attn + x, ln1g_ref[0], ln1b_ref[0])

        # -------------------------------- FFN ---------------------------------
        h1 = (jnp.dot(x.astype(jnp.bfloat16), w1_ref[0],
                      preferred_element_type=jnp.float32) + b1_ref[0])
        # TODO(synk): HF BERT uses exact erf-gelu; tanh approximation used here.
        h1 = jax.nn.gelu(h1, approximate=True)
        ffn = (jnp.dot(h1.astype(jnp.bfloat16), w2_ref[0],
                       preferred_element_type=jnp.float32) + b2_ref[0])

        act_ref[...] = _layer_norm(ffn + x, ln2g_ref[0], ln2b_ref[0])

        # ------ fused NER + CLS classifier heads on the LAST layer step -------
        @pl.when(l == L - 1)
        def _():
            y = act_ref[...]                                 # final sequence_output tile
            # 0/1 selection matmul == gather(token-start rows) + pad_sequence + CLS row
            rows = jnp.dot(sel_ref[0], y, preferred_element_type=jnp.float32)  # [R, H]
            out_ref[...] = (jnp.dot(rows.astype(jnp.bfloat16), head_w_ref[...],
                                    preferred_element_type=jnp.float32)
                            + head_b_ref[...])               # [R, 128] lane-dense

    return kernel


# ------------------------------ parameters ----------------------------------

def init_params(key, cfg):
    H, I, L = cfg['hidden'], cfg['intermediate'], cfg['n_layers']
    NPAD = cfg['head_pad']

    def nrm(k, shape, dtype=jnp.float32):
        return (0.02 * jax.random.normal(k, shape, jnp.float32)).astype(dtype)

    keys = iter(jax.random.split(key, 16))
    params = dict(
        word_emb=nrm(next(keys), (cfg['vocab'], H)),
        pos_emb=nrm(next(keys), (cfg['max_pos'], H)),
        type_emb=nrm(next(keys), (2, H)),
        emb_ln_g=jnp.ones((H,), jnp.float32),
        emb_ln_b=jnp.zeros((H,), jnp.float32),
        # encoder weights stacked along the layer dim; matmul weights in bf16
        wqkv=nrm(next(keys), (L, H, 3 * H), jnp.bfloat16),
        bqkv=jnp.zeros((L, 1, 3 * H), jnp.float32),
        wo=nrm(next(keys), (L, H, H), jnp.bfloat16),
        bo=jnp.zeros((L, 1, H), jnp.float32),
        ln1_g=jnp.ones((L, 1, H), jnp.float32),
        ln1_b=jnp.zeros((L, 1, H), jnp.float32),
        w1=nrm(next(keys), (L, H, I), jnp.bfloat16),
        b1=jnp.zeros((L, 1, I), jnp.float32),
        w2=nrm(next(keys), (L, I, H), jnp.bfloat16),
        b2=jnp.zeros((L, 1, H), jnp.float32),
        ln2_g=jnp.ones((L, 1, H), jnp.float32),
        ln2_b=jnp.zeros((L, 1, H), jnp.float32),
    )
    # fused classifier head: NER in cols [0:3], CLS in cols [3:5], rest zero pad
    ner_w = nrm(next(keys), (H, cfg['num_ner_tags']))
    cls_w = nrm(next(keys), (H, cfg['num_cls_labels']))
    head_w = jnp.zeros((H, NPAD), jnp.float32)
    head_w = head_w.at[:, :cfg['num_ner_tags']].set(ner_w)
    head_w = head_w.at[:, cfg['num_ner_tags']:
                          cfg['num_ner_tags'] + cfg['num_cls_labels']].set(cls_w)
    params['head_w'] = head_w.astype(jnp.bfloat16)
    # TODO(synk): load trained NER/CLS classifier biases into head_b when porting weights.
    params['head_b'] = jnp.zeros((1, NPAD), jnp.float32)
    return params


# ------------------------------ forward pass --------------------------------

def dataset_extraction_forward(params, input_subwords, token_start_idx,
                               token_start_valid, attention_mask, cfg):
    """Mirrors BertForDatasetExtraction.forward with ner_tags=None."""
    B, S = input_subwords.shape
    H, Hh, L, I = cfg['hidden'], cfg['n_heads'], cfg['n_layers'], cfg['intermediate']
    Dh = H // Hh
    H3 = 3 * H
    NT, NC, NPAD = cfg['num_ner_tags'], cfg['num_cls_labels'], cfg['head_pad']
    scale = 1.0 / float(np.sqrt(Dh))
    Tmax = token_start_idx.shape[1]
    R = ((Tmax + 1 + 7) // 8) * 8       # NER rows + CLS row, padded to 8 sublanes

    # embeddings + embedding LayerNorm in the wrapper (HBM gathers are glue)
    emb = (params['word_emb'][input_subwords]
           + params['pos_emb'][:S][None, :, :]
           + params['type_emb'][0][None, None, :])                       # [B, S, H]
    x = _layer_norm(emb, params['emb_ln_g'], params['emb_ln_b']).reshape(B * S, H)

    # HF-style additive key mask, broadcast in-kernel over heads & query rows
    bias = (1.0 - attention_mask.astype(jnp.float32))[:, None, :] * -1e4  # [B,1,S]

    # 0/1 selection matrix: rows 0..Tmax-1 gather token-start rows (zero rows for
    # padding == pad_sequence), row Tmax picks position 0 (CLS); remaining rows pad.
    sel = jnp.zeros((B, R, S), jnp.float32)
    sel = sel.at[jnp.arange(B)[:, None], jnp.arange(Tmax)[None, :],
                 token_start_idx].set(token_start_valid.astype(jnp.float32))
    sel = sel.at[:, Tmax, 0].set(1.0)

    kernel = make_encoder_kernel(S, H, Hh, Dh, L, scale)

    in_specs = [
        pl.BlockSpec((S, H), lambda bt, l: (bt, 0)),          # x (post emb-LN)
        pl.BlockSpec((1, 1, S), lambda bt, l: (bt, 0, 0)),    # attention bias
        pl.BlockSpec((1, R, S), lambda bt, l: (bt, 0, 0)),    # head row-selection
        pl.BlockSpec((1, H, H3), lambda bt, l: (l, 0, 0)),    # wqkv
        pl.BlockSpec((1, 1, H3), lambda bt, l: (l, 0, 0)),    # bqkv
        pl.BlockSpec((1, H, H), lambda bt, l: (l, 0, 0)),     # wo
        pl.BlockSpec((1, 1, H), lambda bt, l: (l, 0, 0)),     # bo
        pl.BlockSpec((1, 1, H), lambda bt, l: (l, 0, 0)),     # ln1_g
        pl.BlockSpec((1, 1, H), lambda bt, l: (l, 0, 0)),     # ln1_b
        pl.BlockSpec((1, H, I), lambda bt, l: (l, 0, 0)),     # w1
        pl.BlockSpec((1, 1, I), lambda bt, l: (l, 0, 0)),     # b1
        pl.BlockSpec((1, I, H), lambda bt, l: (l, 0, 0)),     # w2
        pl.BlockSpec((1, 1, H), lambda bt, l: (l, 0, 0)),     # b2
        pl.BlockSpec((1, 1, H), lambda bt, l: (l, 0, 0)),     # ln2_g
        pl.BlockSpec((1, 1, H), lambda bt, l: (l, 0, 0)),     # ln2_b
        pl.BlockSpec((H, NPAD), lambda bt, l: (0, 0)),        # head_w (fused NER|CLS)
        pl.BlockSpec((1, NPAD), lambda bt, l: (0, 0)),        # head_b
    ]
    out_specs = pl.BlockSpec((R, NPAD), lambda bt, l: (bt, 0))

    head_out = pl.pallas_call(
        kernel,
        out_shape=jax.ShapeDtypeStruct((B * R, NPAD), jnp.float32),
        grid=(B, L),                                          # (batch tile, layer)
        in_specs=in_specs,
        out_specs=out_specs,
        scratch_shapes=[pltpu.VMEM((S, H), jnp.float32)],     # resident activation
        compiler_params=pltpu.CompilerParams(
            dimension_semantics=("parallel", "arbitrary")),
    )(x, bias, sel,
      params['wqkv'], params['bqkv'], params['wo'], params['bo'],
      params['ln1_g'], params['ln1_b'], params['w1'], params['b1'],
      params['w2'], params['b2'], params['ln2_g'], params['ln2_b'],
      params['head_w'], params['head_b'])

    head_out = head_out.reshape(B, R, NPAD)
    ner_logits = head_out[:, :Tmax, :NT]                      # [B, Tmax, 3]
    cls_logits = head_out[:, Tmax, NT:NT + NC]                # [B, 2]

    # TODO(synk): CRF negative log-likelihood + CrossEntropy loss branch
    # (ner_tags is not None) not implemented; only the logits path is kernelized.
    return ner_logits, cls_logits


# ---------------------------------- main ------------------------------------

if __name__ == "__main__":
    cfg = CFG
    B, S = 2, 8
    key = jax.random.PRNGKey(0)
    k_par, k_ids = jax.random.split(key)

    params = init_params(k_par, cfg)

    input_subwords = jax.random.randint(k_ids, (B, S), 0, cfg['vocab'], dtype=jnp.int32)
    attention_mask = jnp.ones((B, S), jnp.float32)

    # binary token-start indicators (as in the PyTorch module), concrete in-script
    input_token_start_indexs = np.array([[1, 1, 0, 1, 1, 0, 1, 0],
                                         [1, 0, 1, 0, 1, 0, 0, 0]], dtype=np.int32)
    starts = [np.nonzero(row)[0] for row in input_token_start_indexs]
    Tmax = max(len(s) for s in starts)
    token_start_idx = np.zeros((B, Tmax), dtype=np.int32)
    token_start_valid = np.zeros((B, Tmax), dtype=np.float32)
    for b, s in enumerate(starts):
        token_start_idx[b, :len(s)] = s
        token_start_valid[b, :len(s)] = 1.0
    token_start_idx = jnp.asarray(token_start_idx)
    token_start_valid = jnp.asarray(token_start_valid)

    ner_logits, cls_logits = dataset_extraction_forward(
        params, input_subwords, token_start_idx, token_start_valid,
        attention_mask, cfg)

    jax.block_until_ready(ner_logits)
    jax.block_until_ready(cls_logits)

    assert ner_logits.shape == (B, Tmax, cfg['num_ner_tags'])
    assert cls_logits.shape == (B, cfg['num_cls_labels'])
    assert bool(jnp.all(jnp.isfinite(ner_logits))) and bool(jnp.all(jnp.isfinite(cls_logits)))
    print("KERNEL_OK")
</pallas_src>

<mosaic_0001>
module attributes {stable_mosaic.version = 11 : i64} {
  func.func @kernel(%arg0: i32, %arg1: i32, %arg2: memref<8x32xf32, #tpu.memory_space<vmem>>, %arg3: memref<1x1x8xf32, #tpu.memory_space<vmem>>, %arg4: memref<1x8x8xf32, #tpu.memory_space<vmem>>, %arg5: memref<1x32x96xbf16, #tpu.memory_space<vmem>>, %arg6: memref<1x1x96xf32, #tpu.memory_space<vmem>>, %arg7: memref<1x32x32xbf16, #tpu.memory_space<vmem>>, %arg8: memref<1x1x32xf32, #tpu.memory_space<vmem>>, %arg9: memref<1x1x32xf32, #tpu.memory_space<vmem>>, %arg10: memref<1x1x32xf32, #tpu.memory_space<vmem>>, %arg11: memref<1x32x64xbf16, #tpu.memory_space<vmem>>, %arg12: memref<1x1x64xf32, #tpu.memory_space<vmem>>, %arg13: memref<1x64x32xbf16, #tpu.memory_space<vmem>>, %arg14: memref<1x1x32xf32, #tpu.memory_space<vmem>>, %arg15: memref<1x1x32xf32, #tpu.memory_space<vmem>>, %arg16: memref<1x1x32xf32, #tpu.memory_space<vmem>>, %arg17: memref<32x128xbf16, #tpu.memory_space<vmem>>, %arg18: memref<1x128xf32, #tpu.memory_space<vmem>>, %arg19: memref<8x128xf32, #tpu.memory_space<vmem>>, %arg20: memref<8x32xf32, #tpu.memory_space<vmem>>) attributes {dimension_semantics = [#tpu.dimension_semantics<parallel>, #tpu.dimension_semantics<arbitrary>], iteration_bounds = array<i64: 2, 2>, scalar_prefetch = 0 : i64, scratch_operands = 1 : i64, tpu.core_type = #tpu.core_type<tc>, window_params = [{transform_indices = @transform_0, window_bounds = array<i64: 8, 32>}, {transform_indices = @transform_1, window_bounds = array<i64: 1, 1, 8>}, {transform_indices = @transform_2, window_bounds = array<i64: 1, 8, 8>}, {transform_indices = @transform_3, window_bounds = array<i64: 1, 32, 96>}, {transform_indices = @transform_4, window_bounds = array<i64: 1, 1, 96>}, {transform_indices = @transform_5, window_bounds = array<i64: 1, 32, 32>}, {transform_indices = @transform_6, window_bounds = array<i64: 1, 1, 32>}, {transform_indices = @transform_7, window_bounds = array<i64: 1, 1, 32>}, {transform_indices = @transform_8, window_bounds = array<i64: 1, 1, 32>}, {transform_indices = @transform_9, window_bounds = array<i64: 1, 32, 64>}, {transform_indices = @transform_10, window_bounds = array<i64: 1, 1, 64>}, {transform_indices = @transform_11, window_bounds = array<i64: 1, 64, 32>}, {transform_indices = @transform_12, window_bounds = array<i64: 1, 1, 32>}, {transform_indices = @transform_13, window_bounds = array<i64: 1, 1, 32>}, {transform_indices = @transform_14, window_bounds = array<i64: 1, 1, 32>}, {pipeline_mode = #tpu.pipeline_mode<synchronous>, transform_indices = @transform_15, window_bounds = array<i64: 32, 128>}, {pipeline_mode = #tpu.pipeline_mode<synchronous>, transform_indices = @transform_16, window_bounds = array<i64: 1, 128>}, {transform_indices = @transform_17, window_bounds = array<i64: 8, 128>}]} {
    %c0_i32 = arith.constant 0 : i32
    %0 = arith.cmpi eq, %arg1, %c0_i32 : i32
    %1 = arith.extui %0 : i1 to i32
    %c0_i32_0 = arith.constant 0 : i32
    %2 = arith.cmpi ne, %1, %c0_i32_0 : i32
    scf.if %2 {
      %c0_66 = arith.constant 0 : index
      %c0_67 = arith.constant 0 : index
      %133 = vector.load %arg2[%c0_66, %c0_67] : memref<8x32xf32, #tpu.memory_space<vmem>>, vector<8x32xf32>
      %c0_68 = arith.constant 0 : index
      %c0_69 = arith.constant 0 : index
      %134 = vector.load %arg20[%c0_68, %c0_69] : memref<8x32xf32, #tpu.memory_space<vmem>>, vector<8x32xf32>
      tpu.vector_store %arg20[%c0_68, %c0_69], %133 {strides = array<i32>} : memref<8x32xf32, #tpu.memory_space<vmem>>, vector<8x32xf32>,
    } else {
    }
    %c0 = arith.constant 0 : index
    %c0_1 = arith.constant 0 : index
    %3 = vector.load %arg20[%c0, %c0_1] : memref<8x32xf32, #tpu.memory_space<vmem>>, vector<8x32xf32>
    %c0_2 = arith.constant 0 : index
    %c0_3 = arith.constant 0 : index
    %c0_4 = arith.constant 0 : index
    %4 = vector.load %arg3[%c0_2, %c0_3, %c0_4] : memref<1x1x8xf32, #tpu.memory_space<vmem>>, vector<1x1x8xf32>
    %5 = arith.truncf %3 : vector<8x32xf32> to vector<8x32xbf16>
    %c0_5 = arith.constant 0 : index
    %c0_6 = arith.constant 0 : index
    %c0_7 = arith.constant 0 : index
    %6 = vector.load %arg5[%c0_5, %c0_6, %c0_7] : memref<1x32x96xbf16, #tpu.memory_space<vmem>>, vector<1x32x96xbf16>
    %7 = vector.shape_cast %6 : vector<1x32x96xbf16> to vector<32x96xbf16>
    %cst = arith.constant dense<0.000000e+00> : vector<8x96xf32>
    %8 = tpu.matmul %5, %7, %cst {dimension_numbers = #tpu.dot_dimension_numbers<[1], [0], [0], [1], [0, 0, 1, 1], [], []>} : vector<8x32xbf16>, vector<32x96xbf16>, vector<8x96xf32> -> vector<8x96xf32>
    %c0_8 = arith.constant 0 : index
    %c0_9 = arith.constant 0 : index
    %c0_10 = arith.constant 0 : index
    %9 = vector.load %arg6[%c0_8, %c0_9, %c0_10] : memref<1x1x96xf32, #tpu.memory_space<vmem>>, vector<1x1x96xf32>
    %10 = vector.shape_cast %9 : vector<1x1x96xf32> to vector<1x96xf32>
    %11 = vector.broadcast %10 : vector<1x96xf32> to vector<8x96xf32>
    %12 = arith.addf %8, %11 : vector<8x96xf32>
    %13 = vector.shape_cast %12 : vector<8x96xf32> to vector<8x6x16xf32>
    %14 = tpu.transpose %13, [1, 0, 2] : vector<8x6x16xf32> -> vector<6x8x16xf32>
    %15 = arith.truncf %14 : vector<6x8x16xf32> to vector<6x8x16xbf16>
    %16 = vector.extract_strided_slice %15 {offsets = [0, 0, 0], sizes = [2, 8, 16], strides = [1, 1, 1]} : vector<6x8x16xbf16> to vector<2x8x16xbf16>
    %17 = vector.extract_strided_slice %15 {offsets = [2, 0, 0], sizes = [2, 8, 16], strides = [1, 1, 1]} : vector<6x8x16xbf16> to vector<2x8x16xbf16>
    %18 = vector.extract_strided_slice %15 {offsets = [4, 0, 0], sizes = [2, 8, 16], strides = [1, 1, 1]} : vector<6x8x16xbf16> to vector<2x8x16xbf16>
    "tpu.trace_start"() <{level = 10 : i32, message = "hqd,hkd->hqk"}> : () -> ()
    %cst_11 = arith.constant dense<0.000000e+00> : vector<2x8x8xf32>
    %19 = tpu.matmul %16, %17, %cst_11 {dimension_numbers = #tpu.dot_dimension_numbers<[2], [2], [1], [1], [0, 0, 0, 1, 1, 1], [0], [0]>} : vector<2x8x16xbf16>, vector<2x8x16xbf16>, vector<2x8x8xf32> -> vector<2x8x8xf32>
    "tpu.trace_stop"() : () -> ()
    %cst_12 = arith.constant 2.500000e-01 : f32
    %20 = vector.broadcast %cst_12 : f32 to vector<2x8x8xf32>
    %21 = arith.mulf %19, %20 : vector<2x8x8xf32>
    %22 = vector.broadcast %4 : vector<1x1x8xf32> to vector<2x8x8xf32>
    %23 = arith.addf %21, %22 : vector<2x8x8xf32>
    %cst_13 = arith.constant dense<0xFF800000> : vector<2x8xf32>
    %24 = vector.multi_reduction <maximumf>, %23, %cst_13 [2] : vector<2x8x8xf32> to vector<2x8xf32>
    %25 = vector.shape_cast %24 : vector<2x8xf32> to vector<2x8x1xf32>
    %26 = vector.broadcast %25 : vector<2x8x1xf32> to vector<2x8x8xf32>
    %27 = arith.subf %23, %26 : vector<2x8x8xf32>
    %28 = math.exp %27 : vector<2x8x8xf32>
    %cst_14 = arith.constant dense<0.000000e+00> : vector<2x8xf32>
    %29 = vector.multi_reduction <add>, %28, %cst_14 [2] : vector<2x8x8xf32> to vector<2x8xf32>
    %30 = vector.shape_cast %29 : vector<2x8xf32> to vector<2x8x1xf32>
    %31 = tpu.reciprocal %30 {approx = true} : vector<2x8x1xf32> -> vector<2x8x1xf32>
    %32 = vector.broadcast %31 : vector<2x8x1xf32> to vector<2x8x8xf32>
    %33 = arith.mulf %28, %32 : vector<2x8x8xf32>
    %34 = arith.truncf %33 : vector<2x8x8xf32> to vector<2x8x8xbf16>
    "tpu.trace_start"() <{level = 10 : i32, message = "hqk,hkd->hqd"}> : () -> ()
    %cst_15 = arith.constant dense<0.000000e+00> : vector<2x8x16xf32>
    %35 = tpu.matmul %34, %18, %cst_15 {dimension_numbers = #tpu.dot_dimension_numbers<[2], [1], [1], [2], [0, 0, 0, 1, 1, 2], [0], [0]>} : vector<2x8x8xbf16>, vector<2x8x16xbf16>, vector<2x8x16xf32> -> vector<2x8x16xf32>
    "tpu.trace_stop"() : () -> ()
    %36 = tpu.transpose %35, [1, 0, 2] : vector<2x8x16xf32> -> vector<8x2x16xf32>
    %37 = vector.shape_cast %36 : vector<8x2x16xf32> to vector<8x32xf32>
    %38 = arith.truncf %37 : vector<8x32xf32> to vector<8x32xbf16>
    %c0_16 = arith.constant 0 : index
    %c0_17 = arith.constant 0 : index
    %c0_18 = arith.constant 0 : index
    %39 = vector.load %arg7[%c0_16, %c0_17, %c0_18] : memref<1x32x32xbf16, #tpu.memory_space<vmem>>, vector<1x32x32xbf16>
    %40 = vector.shape_cast %39 : vector<1x32x32xbf16> to vector<32x32xbf16>
    %cst_19 = arith.constant dense<0.000000e+00> : vector<8x32xf32>
    %41 = tpu.matmul %38, %40, %cst_19 {dimension_numbers = #tpu.dot_dimension_numbers<[1], [0], [0], [1], [0, 0, 1, 1], [], []>} : vector<8x32xbf16>, vector<32x32xbf16>, vector<8x32xf32> -> vector<8x32xf32>
    %c0_20 = arith.constant 0 : index
    %c0_21 = arith.constant 0 : index
    %c0_22 = arith.constant 0 : index
    %42 = vector.load %arg8[%c0_20, %c0_21, %c0_22] : memref<1x1x32xf32, #tpu.memory_space<vmem>>, vector<1x1x32xf32>
    %43 = vector.shape_cast %42 : vector<1x1x32xf32> to vector<1x32xf32>
    %44 = vector.broadcast %43 : vector<1x32xf32> to vector<8x32xf32>
    %45 = arith.addf %41, %44 : vector<8x32xf32>
    %46 = arith.addf %45, %3 : vector<8x32xf32>
    %c0_23 = arith.constant 0 : index
    %c0_24 = arith.constant 0 : index
    %c0_25 = arith.constant 0 : index
    %47 = vector.load %arg9[%c0_23, %c0_24, %c0_25] : memref<1x1x32xf32, #tpu.memory_space<vmem>>, vector<1x1x32xf32>
    %48 = vector.shape_cast %47 : vector<1x1x32xf32> to vector<1x32xf32>
    %c0_26 = arith.constant 0 : index
    %c0_27 = arith.constant 0 : index
    %c0_28 = arith.constant 0 : index
    %49 = vector.load %arg10[%c0_26, %c0_27, %c0_28] : memref<1x1x32xf32, #tpu.memory_space<vmem>>, vector<1x1x32xf32>
    %50 = vector.shape_cast %49 : vector<1x1x32xf32> to vector<1x32xf32>
    %cst_29 = arith.constant dense<0.000000e+00> : vector<8xf32>
    %51 = vector.multi_reduction <add>, %46, %cst_29 [1] : vector<8x32xf32> to vector<8xf32>
    %52 = vector.shape_cast %51 : vector<8xf32> to vector<8x1xf32>
    %cst_30 = arith.constant 3.200000e+01 : f32
    %53 = vector.broadcast %cst_30 : f32 to vector<8x1xf32>
    %54 = arith.divf %52, %53 : vector<8x1xf32>
    %55 = vector.broadcast %54 : vector<8x1xf32> to vector<8x32xf32>
    %56 = arith.subf %46, %55 : vector<8x32xf32>
    %57 = arith.mulf %56, %56 : vector<8x32xf32>
    %cst_31 = arith.constant dense<0.000000e+00> : vector<8xf32>
    %58 = vector.multi_reduction <add>, %57, %cst_31 [1] : vector<8x32xf32> to vector<8xf32>
    %59 = vector.shape_cast %58 : vector<8xf32> to vector<8x1xf32>
    %cst_32 = arith.constant 3.200000e+01 : f32
    %60 = vector.broadcast %cst_32 : f32 to vector<8x1xf32>
    %61 = arith.divf %59, %60 : vector<8x1xf32>
    %62 = vector.broadcast %54 : vector<8x1xf32> to vector<8x32xf32>
    %63 = arith.subf %46, %62 : vector<8x32xf32>
    %cst_33 = arith.constant 9.99999996E-13 : f32
    %64 = vector.broadcast %cst_33 : f32 to vector<8x1xf32>
    %65 = arith.addf %61, %64 : vector<8x1xf32>
    %66 = math.rsqrt %65 : vector<8x1xf32>
    %67 = vector.broadcast %66 : vector<8x1xf32> to vector<8x32xf32>
    %68 = arith.mulf %63, %67 : vector<8x32xf32>
    %69 = vector.broadcast %48 : vector<1x32xf32> to vector<8x32xf32>
    %70 = arith.mulf %68, %69 : vector<8x32xf32>
    %71 = vector.broadcast %50 : vector<1x32xf32> to vector<8x32xf32>
    %72 = arith.addf %70, %71 : vector<8x32xf32>
    %73 = arith.truncf %72 : vector<8x32xf32> to vector<8x32xbf16>
    %c0_34 = arith.constant 0 : index
    %c0_35 = arith.constant 0 : index
    %c0_36 = arith.constant 0 : index
    %74 = vector.load %arg11[%c0_34, %c0_35, %c0_36] : memref<1x32x64xbf16, #tpu.memory_space<vmem>>, vector<1x32x64xbf16>
    %75 = vector.shape_cast %74 : vector<1x32x64xbf16> to vector<32x64xbf16>
    %cst_37 = arith.constant dense<0.000000e+00> : vector<8x64xf32>
    %76 = tpu.matmul %73, %75, %cst_37 {dimension_numbers = #tpu.dot_dimension_numbers<[1], [0], [0], [1], [0, 0, 1, 1], [], []>} : vector<8x32xbf16>, vector<32x64xbf16>, vector<8x64xf32> -> vector<8x64xf32>
    %c0_38 = arith.constant 0 : index
    %c0_39 = arith.constant 0 : index
    %c0_40 = arith.constant 0 : index
    %77 = vector.load %arg12[%c0_38, %c0_39, %c0_40] : memref<1x1x64xf32, #tpu.memory_space<vmem>>, vector<1x1x64xf32>
    %78 = vector.shape_cast %77 : vector<1x1x64xf32> to vector<1x64xf32>
    %79 = vector.broadcast %78 : vector<1x64xf32> to vector<8x64xf32>
    %80 = arith.addf %76, %79 : vector<8x64xf32>
    %81 = arith.mulf %80, %80 : vector<8x64xf32>
    %82 = arith.mulf %80, %81 : vector<8x64xf32>
    %cst_41 = arith.constant 4.471500e-02 : f32
    %83 = vector.broadcast %cst_41 : f32 to vector<8x64xf32>
    %84 = arith.mulf %83, %82 : vector<8x64xf32>
    %85 = arith.addf %80, %84 : vector<8x64xf32>
    %cst_42 = arith.constant 0.797884583 : f32
    %86 = vector.broadcast %cst_42 : f32 to vector<8x64xf32>
    %87 = arith.mulf %86, %85 : vector<8x64xf32>
    %88 = math.tanh %87 : vector<8x64xf32>
    %cst_43 = arith.constant 1.000000e+00 : f32
    %89 = vector.broadcast %cst_43 : f32 to vector<8x64xf32>
    %90 = arith.addf %89, %88 : vector<8x64xf32>
    %cst_44 = arith.constant 5.000000e-01 : f32
    %91 = vector.broadcast %cst_44 : f32 to vector<8x64xf32>
    %92 = arith.mulf %91, %90 : vector<8x64xf32>
    %93 = arith.mulf %80, %92 : vector<8x64xf32>
    %94 = arith.truncf %93 : vector<8x64xf32> to vector<8x64xbf16>
    %c0_45 = arith.constant 0 : index
    %c0_46 = arith.constant 0 : index
    %c0_47 = arith.constant 0 : index
    %95 = vector.load %arg13[%c0_45, %c0_46, %c0_47] : memref<1x64x32xbf16, #tpu.memory_space<vmem>>, vector<1x64x32xbf16>
    %96 = vector.shape_cast %95 : vector<1x64x32xbf16> to vector<64x32xbf16>
    %cst_48 = arith.constant dense<0.000000e+00> : vector<8x32xf32>
    %97 = tpu.matmul %94, %96, %cst_48 {dimension_numbers = #tpu.dot_dimension_numbers<[1], [0], [0], [1], [0, 0, 1, 1], [], []>} : vector<8x64xbf16>, vector<64x32xbf16>, vector<8x32xf32> -> vector<8x32xf32>
    %c0_49 = arith.constant 0 : index
    %c0_50 = arith.constant 0 : index
    %c0_51 = arith.constant 0 : index
    %98 = vector.load %arg14[%c0_49, %c0_50, %c0_51] : memref<1x1x32xf32, #tpu.memory_space<vmem>>, vector<1x1x32xf32>
    %99 = vector.shape_cast %98 : vector<1x1x32xf32> to vector<1x32xf32>
    %100 = vector.broadcast %99 : vector<1x32xf32> to vector<8x32xf32>
    %101 = arith.addf %97, %100 : vector<8x32xf32>
    %102 = arith.addf %101, %72 : vector<8x32xf32>
    %c0_52 = arith.constant 0 : index
    %c0_53 = arith.constant 0 : index
    %c0_54 = arith.constant 0 : index
    %103 = vector.load %arg15[%c0_52, %c0_53, %c0_54] : memref<1x1x32xf32, #tpu.memory_space<vmem>>, vector<1x1x32xf32>
    %104 = vector.shape_cast %103 : vector<1x1x32xf32> to vector<1x32xf32>
    %c0_55 = arith.constant 0 : index
    %c0_56 = arith.constant 0 : index
    %c0_57 = arith.constant 0 : index
    %105 = vector.load %arg16[%c0_55, %c0_56, %c0_57] : memref<1x1x32xf32, #tpu.memory_space<vmem>>, vector<1x1x32xf32>
    %106 = vector.shape_cast %105 : vector<1x1x32xf32> to vector<1x32xf32>
    %cst_58 = arith.constant dense<0.000000e+00> : vector<8xf32>
    %107 = vector.multi_reduction <add>, %102, %cst_58 [1] : vector<8x32xf32> to vector<8xf32>
    %108 = vector.shape_cast %107 : vector<8xf32> to vector<8x1xf32>
    %cst_59 = arith.constant 3.200000e+01 : f32
    %109 = vector.broadcast %cst_59 : f32 to vector<8x1xf32>
    %110 = arith.divf %108, %109 : vector<8x1xf32>
    %111 = vector.broadcast %110 : vector<8x1xf32> to vector<8x32xf32>
    %112 = arith.subf %102, %111 : vector<8x32xf32>
    %113 = arith.mulf %112, %112 : vector<8x32xf32>
    %cst_60 = arith.constant dense<0.000000e+00> : vector<8xf32>
    %114 = vector.multi_reduction <add>, %113, %cst_60 [1] : vector<8x32xf32> to vector<8xf32>
    %115 = vector.shape_cast %114 : vector<8xf32> to vector<8x1xf32>
    %cst_61 = arith.constant 3.200000e+01 : f32
    %116 = vector.broadcast %cst_61 : f32 to vector<8x1xf32>
    %117 = arith.divf %115, %116 : vector<8x1xf32>
    %118 = vector.broadcast %110 : vector<8x1xf32> to vector<8x32xf32>
    %119 = arith.subf %102, %118 : vector<8x32xf32>
    %cst_62 = arith.constant 9.99999996E-13 : f32
    %120 = vector.broadcast %cst_62 : f32 to vector<8x1xf32>
    %121 = arith.addf %117, %120 : vector<8x1xf32>
    %122 = math.rsqrt %121 : vector<8x1xf32>
    %123 = vector.broadcast %122 : vector<8x1xf32> to vector<8x32xf32>
    %124 = arith.mulf %119, %123 : vector<8x32xf32>
    %125 = vector.broadcast %104 : vector<1x32xf32> to vector<8x32xf32>
    %126 = arith.mulf %124, %125 : vector<8x32xf32>
    %127 = vector.broadcast %106 : vector<1x32xf32> to vector<8x32xf32>
    %128 = arith.addf %126, %127 : vector<8x32xf32>
    %c0_63 = arith.constant 0 : index
    %c0_64 = arith.constant 0 : index
    %129 = vector.load %arg20[%c0_63, %c0_64] : memref<8x32xf32, #tpu.memory_space<vmem>>, vector<8x32xf32>
    tpu.vector_store %arg20[%c0_63, %c0_64], %128 {strides = array<i32>} : memref<8x32xf32, #tpu.memory_space<vmem>>, vector<8x32xf32>,
    %c1_i32 = arith.constant 1 : i32
    %130 = arith.cmpi eq, %arg1, %c1_i32 : i32
    %131 = arith.extui %130 : i1 to i32
    %c0_i32_65 = arith.constant 0 : i32
    %132 = arith.cmpi ne, %131, %c0_i32_65 : i32
    scf.if %132 {
      %c0_66 = arith.constant 0 : index
      %c0_67 = arith.constant 0 : index
      %133 = vector.load %arg20[%c0_66, %c0_67] : memref<8x32xf32, #tpu.memory_space<vmem>>, vector<8x32xf32>
      %c0_68 = arith.constant 0 : index
      %c0_69 = arith.constant 0 : index
      %c0_70 = arith.constant 0 : index
      %134 = vector.load %arg4[%c0_68, %c0_69, %c0_70] : memref<1x8x8xf32, #tpu.memory_space<vmem>>, vector<1x8x8xf32>
      %135 = vector.shape_cast %134 : vector<1x8x8xf32> to vector<8x8xf32>
      %cst_71 = arith.constant dense<0.000000e+00> : vector<8x32xf32>
      %136 = tpu.matmul %135, %133, %cst_71 {dimension_numbers = #tpu.dot_dimension_numbers<[1], [0], [0], [1], [0, 0, 1, 1], [], []>} : vector<8x8xf32>, vector<8x32xf32>, vector<8x32xf32> -> vector<8x32xf32>
      %137 = arith.truncf %136 : vector<8x32xf32> to vector<8x32xbf16>
      %c0_72 = arith.constant 0 : index
      %c0_73 = arith.constant 0 : index
      %138 = vector.load %arg17[%c0_72, %c0_73] : memref<32x128xbf16, #tpu.memory_space<vmem>>, vector<32x128xbf16>
      %cst_74 = arith.constant dense<0.000000e+00> : vector<8x128xf32>
      %139 = tpu.matmul %137, %138, %cst_74 {dimension_numbers = #tpu.dot_dimension_numbers<[1], [0], [0], [1], [0, 0, 1, 1], [], []>} : vector<8x32xbf16>, vector<32x128xbf16>, vector<8x128xf32> -> vector<8x128xf32>
      %c0_75 = arith.constant 0 : index
      %c0_76 = arith.constant 0 : index
      %140 = vector.load %arg18[%c0_75, %c0_76] : memref<1x128xf32, #tpu.memory_space<vmem>>, vector<1x128xf32>
      %141 = vector.broadcast %140 : vector<1x128xf32> to vector<8x128xf32>
      %142 = arith.addf %139, %141 : vector<8x128xf32>
      %c0_77 = arith.constant 0 : index
      %c0_78 = arith.constant 0 : index
      %143 = vector.load %arg19[%c0_77, %c0_78] : memref<8x128xf32, #tpu.memory_space<vmem>>, vector<8x128xf32>
      tpu.vector_store %arg19[%c0_77, %c0_78], %142 {strides = array<i32>} : memref<8x128xf32, #tpu.memory_space<vmem>>, vector<8x128xf32>,
    } else {
    }
    return
  }
  func.func @transform_0(%arg0: i32, %arg1: i32) -> (i32, i32) {
    %c0_i32 = arith.constant 0 : i32
    %c0_i32_0 = arith.constant 0 : i32
    return %arg0, %c0_i32 : i32, i32
  }
  func.func @transform_1(%arg0: i32, %arg1: i32) -> (i32, i32, i32) {
    %c0_i32 = arith.constant 0 : i32
    %c0_i32_0 = arith.constant 0 : i32
    %c0_i32_1 = arith.constant 0 : i32
    return %arg0, %c0_i32, %c0_i32_0 : i32, i32, i32
  }
  func.func @transform_2(%arg0: i32, %arg1: i32) -> (i32, i32, i32) {
    %c0_i32 = arith.constant 0 : i32
    %c0_i32_0 = arith.constant 0 : i32
    %c0_i32_1 = arith.constant 0 : i32
    return %arg0, %c0_i32, %c0_i32_0 : i32, i32, i32
  }
  func.func @transform_3(%arg0: i32, %arg1: i32) -> (i32, i32, i32) {
    %c0_i32 = arith.constant 0 : i32
    %c0_i32_0 = arith.constant 0 : i32
    %c0_i32_1 = arith.constant 0 : i32
    return %arg1, %c0_i32, %c0_i32_0 : i32, i32, i32
  }
  func.func @transform_4(%arg0: i32, %arg1: i32) -> (i32, i32, i32) {
    %c0_i32 = arith.constant 0 : i32
    %c0_i32_0 = arith.constant 0 : i32
    %c0_i32_1 = arith.constant 0 : i32
    return %arg1, %c0_i32, %c0_i32_0 : i32, i32, i32
  }
  func.func @transform_5(%arg0: i32, %arg1: i32) -> (i32, i32, i32) {
    %c0_i32 = arith.constant 0 : i32
    %c0_i32_0 = arith.constant 0 : i32
    %c0_i32_1 = arith.constant 0 : i32
    return %arg1, %c0_i32, %c0_i32_0 : i32, i32, i32
  }
  func.func @transform_6(%arg0: i32, %arg1: i32) -> (i32, i32, i32) {
    %c0_i32 = arith.constant 0 : i32
    %c0_i32_0 = arith.constant 0 : i32
    %c0_i32_1 = arith.constant 0 : i32
    return %arg1, %c0_i32, %c0_i32_0 : i32, i32, i32
  }
  func.func @transform_7(%arg0: i32, %arg1: i32) -> (i32, i32, i32) {
    %c0_i32 = arith.constant 0 : i32
    %c0_i32_0 = arith.constant 0 : i32
    %c0_i32_1 = arith.constant 0 : i32
    return %arg1, %c0_i32, %c0_i32_0 : i32, i32, i32
  }
  func.func @transform_8(%arg0: i32, %arg1: i32) -> (i32, i32, i32) {
    %c0_i32 = arith.constant 0 : i32
    %c0_i32_0 = arith.constant 0 : i32
    %c0_i32_1 = arith.constant 0 : i32
    return %arg1, %c0_i32, %c0_i32_0 : i32, i32, i32
  }
  func.func @transform_9(%arg0: i32, %arg1: i32) -> (i32, i32, i32) {
    %c0_i32 = arith.constant 0 : i32
    %c0_i32_0 = arith.constant 0 : i32
    %c0_i32_1 = arith.constant 0 : i32
    return %arg1, %c0_i32, %c0_i32_0 : i32, i32, i32
  }
  func.func @transform_10(%arg0: i32, %arg1: i32) -> (i32, i32, i32) {
    %c0_i32 = arith.constant 0 : i32
    %c0_i32_0 = arith.constant 0 : i32
    %c0_i32_1 = arith.constant 0 : i32
    return %arg1, %c0_i32, %c0_i32_0 : i32, i32, i32
  }
  func.func @transform_11(%arg0: i32, %arg1: i32) -> (i32, i32, i32) {
    %c0_i32 = arith.constant 0 : i32
    %c0_i32_0 = arith.constant 0 : i32
    %c0_i32_1 = arith.constant 0 : i32
    return %arg1, %c0_i32, %c0_i32_0 : i32, i32, i32
  }
  func.func @transform_12(%arg0: i32, %arg1: i32) -> (i32, i32, i32) {
    %c0_i32 = arith.constant 0 : i32
    %c0_i32_0 = arith.constant 0 : i32
    %c0_i32_1 = arith.constant 0 : i32
    return %arg1, %c0_i32, %c0_i32_0 : i32, i32, i32
  }
  func.func @transform_13(%arg0: i32, %arg1: i32) -> (i32, i32, i32) {
    %c0_i32 = arith.constant 0 : i32
    %c0_i32_0 = arith.constant 0 : i32
    %c0_i32_1 = arith.constant 0 : i32
    return %arg1, %c0_i32, %c0_i32_0 : i32, i32, i32
  }
  func.func @transform_14(%arg0: i32, %arg1: i32) -> (i32, i32, i32) {
    %c0_i32 = arith.constant 0 : i32
    %c0_i32_0 = arith.constant 0 : i32
    %c0_i32_1 = arith.constant 0 : i32
    return %arg1, %c0_i32, %c0_i32_0 : i32, i32, i32
  }
  func.func @transform_15(%arg0: i32, %arg1: i32) -> (i32, i32) {
    %c0_i32 = arith.constant 0 : i32
    %c0_i32_0 = arith.constant 0 : i32
    %c0_i32_1 = arith.constant 0 : i32
    return %c0_i32, %c0_i32_0 : i32, i32
  }
  func.func @transform_16(%arg0: i32, %arg1: i32) -> (i32, i32) {
    %c0_i32 = arith.constant 0 : i32
    %c0_i32_0 = arith.constant 0 : i32
    %c0_i32_1 = arith.constant 0 : i32
    return %c0_i32, %c0_i32_0 : i32, i32
  }
  func.func @transform_17(%arg0: i32, %arg1: i32) -> (i32, i32) {
    %c0_i32 = arith.constant 0 : i32
    %c0_i32_0 = arith.constant 0 : i32
    return %arg0, %c0_i32 : i32, i32
  }
}

</mosaic_0001>

<llo_original>
// kernel: tpu_custom_call.1
$region0: #{tpu_custom_call.1}
  #allocation0 [shape = 'u32[]', space=smem, size = 0x4, offset = 0x4, fixed_abs, tag = 'smem constant byte address 0x4 - core index']
  #allocation1 [shape = 'u32[72,128]{1,0:T(1,128)}', space=vmem, size = 0x9000, scoped, tag = 'internal scratch']
  #allocation2 [shape = 'f32[8,32]{1,0:T(8,128)}', space=vmem, size = 0x1000, scoped, tag = 'scratch operand']
  %s0 = inlined_call_operand.hbm [shape: f32[16,32], index: 0, kind: input, shape index: {}]
  %s1 = inlined_call_operand.hbm [shape: f32[2,1,8], index: 1, kind: input, shape index: {}]
  %s2 = inlined_call_operand.hbm [shape: f32[2,8,8], index: 2, kind: input, shape index: {}]
  %s3 = inlined_call_operand.vmem [shape: bf16[2,32,96], index: 3, kind: input, shape index: {}]
  %s4 = inlined_call_operand.vmem [shape: f32[2,1,96], index: 4, kind: input, shape index: {}]
  %s5 = inlined_call_operand.vmem [shape: bf16[2,32,32], index: 5, kind: input, shape index: {}]
  %s6 = inlined_call_operand.vmem [shape: f32[2,1,32], index: 6, kind: input, shape index: {}]
  %s7 = inlined_call_operand.hbm [shape: f32[2,1,32], index: 7, kind: input, shape index: {}]
  %s8 = inlined_call_operand.vmem [shape: f32[2,1,32], index: 8, kind: input, shape index: {}]
  %s9 = inlined_call_operand.vmem [shape: bf16[2,32,64], index: 9, kind: input, shape index: {}]
  %s10 = inlined_call_operand.vmem [shape: f32[2,1,64], index: 10, kind: input, shape index: {}]
  %s11 = inlined_call_operand.vmem [shape: bf16[2,64,32], index: 11, kind: input, shape index: {}]
  %s12 = inlined_call_operand.vmem [shape: f32[2,1,32], index: 12, kind: input, shape index: {}]
  %s13 = inlined_call_operand.hbm [shape: f32[2,1,32], index: 13, kind: input, shape index: {}]
  %s14 = inlined_call_operand.vmem [shape: f32[2,1,32], index: 14, kind: input, shape index: {}]
  %s15 = inlined_call_operand.hbm [shape: bf16[32,128], index: 15, kind: input, shape index: {}]
  %s16 = inlined_call_operand.vmem [shape: f32[1,128], index: 16, kind: input, shape index: {}]
  %s17 = inlined_call_operand.hbm [shape: f32[16,128], index: 17, kind: output, shape index: {}]
  %s18 = sld [smem:[#allocation0]]
  $region133: #{tpu_custom_call.1} parent=0
    _
  %s20 = ssub.s32 1, %s18
  %s21 = scalar_select 0, %s20, %s18
  $region1: #{tpu_custom_call.1} parent=0
    #allocation3 [shape = 'u8[8192]{0}', space=vmem, size = 0x2000, scoped, tag = 'input window, operand 0']
    #allocation4 [shape = 's32[2]{0}', space=sflag, size = 0x8, scoped, tag = 'scoped memory for tpu_custom_call.1']
    #allocation5 [shape = 's32[2]{0}', space=sflag, size = 0x8, scoped, tag = 'scoped memory for tpu_custom_call.1']
    #allocation6 [shape = 'u8[1024]{0}', space=vmem, size = 0x400, scoped, tag = 'input window, operand 1']
    #allocation7 [shape = 's32[2]{0}', space=sflag, size = 0x8, scoped, tag = 'scoped memory for tpu_custom_call.1']
    #allocation8 [shape = 'u8[8192]{0}', space=vmem, size = 0x2000, scoped, tag = 'input window, operand 2']
    #allocation9 [shape = 'u8[1024]{0}', space=vmem, size = 0x400, scoped, tag = 'input window, operand 7']
    #allocation10 [shape = 's32[2]{0}', space=sflag, size = 0x8, scoped, tag = 'scoped memory for tpu_custom_call.1']
    #allocation11 [shape = 'u8[1024]{0}', space=vmem, size = 0x400, scoped, tag = 'input window, operand 13']
    #allocation12 [shape = 'u8[8192]{0}', space=vmem, size = 0x2000, scoped, tag = 'input window, operand 15, single buffered']
    #allocation13 [shape = 's32[1]{0}', space=sflag, size = 0x4, scoped, tag = 'scoped memory for tpu_custom_call.1']
    #allocation14 [shape = 'u8[8192]{0}', space=vmem, size = 0x2000, scoped, tag = 'output window, operand 0']
    %22 = vsyncpa [#allocation4], 0
    %s23 = scalar_lea.sflag [#allocation4], 1
    %24 = vsyncpa %s23, 0
    %25 = vsyncpa [#allocation7], 0
    %s26 = scalar_lea.sflag [#allocation7], 1
    %27 = vsyncpa %s26, 0
    %28 = vsyncpa [#allocation10], 0
    %s29 = scalar_lea.sflag [#allocation10], 1
    %30 = vsyncpa %s29, 0
    %31 = vsyncpa [#allocation13], 0
    %32 = vsyncpa [#allocation5], 0
    %s33 = scalar_lea.sflag [#allocation5], 1
    %34 = vsyncpa %s33, 0
    loop: start=0, step=1, limit=6
    $region2: #{tpu_custom_call.1} parent=1 // loop_pre_header
      _
    $region3: #{tpu_custom_call.1} parent=1 // loop_header
      %s36 = sphi 0, %s40
      %p37 = scmp.ge.s32.totalorder %s36, 6
      %s43 = sphi 0, %s55
      %s44 = sphi 0, %s51
      %s45 = sphi 0, %s43
      %s46 = sphi 0, %s44
      %s47 = sphi 0, %s45
      %s48 = sphi 0, %s46
      %s58 = sphi 0, %s60
      %s61 = sphi 0, %s58
      %s62 = sphi 0, %s61
      %s78 = sphi 0, %s62
      %s84 = sphi 0, %s86
      %s87 = sphi 0, %s84
      %s88 = sphi 0, %s87
      %s104 = sphi 0, %s88
      %s110 = sphi 0, %s112
      %s113 = sphi 0, %s110
      %s114 = sphi 0, %s113
      %s130 = sphi 0, %s114
      %s136 = sphi 0, %s138
      %s139 = sphi 0, %s136
      %s140 = sphi 0, %s139
      %s156 = sphi 0, %s140
      %s162 = sphi 0, %s164
      %s165 = sphi 0, %s162
      %s166 = sphi 0, %s165
      %s182 = sphi 0, %s166
      %s188 = sphi 0, %s190
      %s191 = sphi 0, %s188
      %s192 = sphi 0, %s191
      %s208 = sphi 0, %s192
      %s214 = sphi 0, %s216
      %s217 = sphi 0, %s214
      %s218 = sphi 0, %s217
      %s234 = sphi 0, %s218
      %s240 = sphi 0, %s242
      %s243 = sphi 0, %s240
      %s244 = sphi 0, %s243
      %s260 = sphi 0, %s244
      %s266 = sphi 0, %s268
      %s269 = sphi 0, %s266
      %s270 = sphi 0, %s269
      %s286 = sphi 0, %s270
      %s292 = sphi 0, %s294
      %s295 = sphi 0, %s292
      %s296 = sphi 0, %s295
      %s312 = sphi 0, %s296
      %s318 = sphi 0, %s320
      %s321 = sphi 0, %s318
      %s322 = sphi 0, %s321
      %s338 = sphi 0, %s322
      %s344 = sphi 0, %s346
      %s347 = sphi 0, %s344
      %s348 = sphi 0, %s347
      %s364 = sphi 0, %s348
      %s370 = sphi 0, %s372
      %s373 = sphi 0, %s370
      %s374 = sphi 0, %s373
      %s390 = sphi 0, %s374
      %s396 = sphi 0, %s398
      %s399 = sphi 0, %s396
      %s400 = sphi 0, %s399
      %s416 = sphi 0, %s400
      %s422 = sphi 0, %s424
      %s425 = sphi 0, %s422
      %s426 = sphi 0, %s425
      %s442 = sphi 0, %s426
      %s446 = sphi 0, %s446
      %s448 = sphi 0, %s446
      %s449 = sphi 0, %s448
      %s463 = sphi 0, %s449
      %s467 = sphi 0, %s467
      %s469 = sphi 0, %s467
      %s470 = sphi 0, %s469
      %s484 = sphi 0, %s470
      %s490 = sphi 0, %s492
      %s493 = sphi 0, %s490
      %s494 = sphi 0, %s493
      %s510 = sphi 0, %s494
    $region4: #{tpu_custom_call.1} parent=1 // loop_header_branch
      %39 = sbr.rel (%p37) target = $region8
    $region5: #{tpu_custom_call.1} parent=1 // loop_body
      %s41 = ssub.s32 %s36, 1
      %s42 = ssub.s32 %s36, 2
      %s49 = sadd.s32 1, %s44
      %p50 = scmp.ge.s32.totalorder %s49, 2
      %s51 = scalar_select %p50, 0, %s49
      %s52 = sadd.s32 1, %s43
      %s53 = scalar_select %p50, %s52, %s43
      %p54 = scmp.ge.s32.totalorder %s53, 2
      %s55 = scalar_select %p54, 0, %s53
      %s56 = ssub.s32 %s43, %s55
      %p57 = scmp.eq.s32.totalorder %s56, 0
      %s59 = sadd.s32 %s58, 1
      %s60 = scalar_select %p57, %s58, %s59
      %p63 = pneg %p57
      %p64 = scmp.eq.s32.totalorder %s36, 3
      %p65 = por %p63, %p64
      %p66 = scmp.ne.s32.totalorder %s58, %s61
      %p67 = scmp.eq.s32.totalorder %s36, 0
      %p68 = por %p66, %p67
      %p69 = scmp.ne.s32.totalorder %s58, %s61
      %p70 = scmp.eq.s32.totalorder %s41, 3
      %p71 = por %p69, %p70
      %p72 = scmp.ne.s32.totalorder %s61, %s62
      %p73 = scmp.eq.s32.totalorder %s41, 0
      %p74 = por %p72, %p73
      %p75 = scmp.ne.s32.totalorder %s61, %s62
      %p76 = scmp.eq.s32.totalorder %s42, 3
      %p77 = por %p75, %p76
      %p79 = scmp.ne.s32.totalorder %s62, %s78
      %p80 = scmp.eq.s32.totalorder %s42, 0
      %p81 = por %p79, %p80
      %s82 = ssub.s32 %s43, %s55
      %p83 = scmp.eq.s32.totalorder %s82, 0
      %s85 = sadd.s32 %s84, 1
      %s86 = scalar_select %p83, %s84, %s85
      %p89 = pneg %p83
      %p90 = scmp.eq.s32.totalorder %s36, 3
      %p91 = por %p89, %p90
      %p92 = scmp.ne.s32.totalorder %s84, %s87
      %p93 = scmp.eq.s32.totalorder %s36, 0
      %p94 = por %p92, %p93
      %p95 = scmp.ne.s32.totalorder %s84, %s87
      %p96 = scmp.eq.s32.totalorder %s41, 3
      %p97 = por %p95, %p96
      %p98 = scmp.ne.s32.totalorder %s87, %s88
      %p99 = scmp.eq.s32.totalorder %s41, 0
      %p100 = por %p98, %p99
      %p101 = scmp.ne.s32.totalorder %s87, %s88
      %p102 = scmp.eq.s32.totalorder %s42, 3
      %p103 = por %p101, %p102
      %p105 = scmp.ne.s32.totalorder %s88, %s104
      %p106 = scmp.eq.s32.totalorder %s42, 0
      %p107 = por %p105, %p106
      %s108 = ssub.s32 %s43, %s55
      %p109 = scmp.eq.s32.totalorder %s108, 0
      %s111 = sadd.s32 %s110, 1
      %s112 = scalar_select %p109, %s110, %s111
      %p115 = pneg %p109
      %p116 = scmp.eq.s32.totalorder %s36, 3
      %p117 = por %p115, %p116
      %p118 = scmp.ne.s32.totalorder %s110, %s113
      %p119 = scmp.eq.s32.totalorder %s36, 0
      %p120 = por %p118, %p119
      %p121 = scmp.ne.s32.totalorder %s110, %s113
      %p122 = scmp.eq.s32.totalorder %s41, 3
      %p123 = por %p121, %p122
      %p124 = scmp.ne.s32.totalorder %s113, %s114
      %p125 = scmp.eq.s32.totalorder %s41, 0
      %p126 = por %p124, %p125
      %p127 = scmp.ne.s32.totalorder %s113, %s114
      %p128 = scmp.eq.s32.totalorder %s42, 3
      %p129 = por %p127, %p128
      %p131 = scmp.ne.s32.totalorder %s114, %s130
      %p132 = scmp.eq.s32.totalorder %s42, 0
      %p133 = por %p131, %p132
      %s134 = ssub.s32 %s44, %s51
      %p135 = scmp.eq.s32.totalorder %s134, 0
      %s137 = sadd.s32 %s136, 1
      %s138 = scalar_select %p135, %s136, %s137
      %p141 = pneg %p135
      %p142 = scmp.eq.s32.totalorder %s36, 3
      %p143 = por %p141, %p142
      %p144 = scmp.ne.s32.totalorder %s136, %s139
      %p145 = scmp.eq.s32.totalorder %s36, 0
      %p146 = por %p144, %p145
      %p147 = scmp.ne.s32.totalorder %s136, %s139
      %p148 = scmp.eq.s32.totalorder %s41, 3
      %p149 = por %p147, %p148
      %p150 = scmp.ne.s32.totalorder %s139, %s140
      %p151 = scmp.eq.s32.totalorder %s41, 0
      %p152 = por %p150, %p151
      %p153 = scmp.ne.s32.totalorder %s139, %s140
      %p154 = scmp.eq.s32.totalorder %s42, 3
      %p155 = por %p153, %p154
      %p157 = scmp.ne.s32.totalorder %s140, %s156
      %p158 = scmp.eq.s32.totalorder %s42, 0
      %p159 = por %p157, %p158
      %s160 = ssub.s32 %s44, %s51
      %p161 = scmp.eq.s32.totalorder %s160, 0
      %s163 = sadd.s32 %s162, 1
      %s164 = scalar_select %p161, %s162, %s163
      %p167 = pneg %p161
      %p168 = scmp.eq.s32.totalorder %s36, 3
      %p169 = por %p167, %p168
      %p170 = scmp.ne.s32.totalorder %s162, %s165
      %p171 = scmp.eq.s32.totalorder %s36, 0
      %p172 = por %p170, %p171
      %p173 = scmp.ne.s32.totalorder %s162, %s165
      %p174 = scmp.eq.s32.totalorder %s41, 3
      %p175 = por %p173, %p174
      %p176 = scmp.ne.s32.totalorder %s165, %s166
      %p177 = scmp.eq.s32.totalorder %s41, 0
      %p178 = por %p176, %p177
      %p179 = scmp.ne.s32.totalorder %s165, %s166
      %p180 = scmp.eq.s32.totalorder %s42, 3
      %p181 = por %p179, %p180
      %p183 = scmp.ne.s32.totalorder %s166, %s182
      %p184 = scmp.eq.s32.totalorder %s42, 0
      %p185 = por %p183, %p184
      %s186 = ssub.s32 %s44, %s51
      %p187 = scmp.eq.s32.totalorder %s186, 0
      %s189 = sadd.s32 %s188, 1
      %s190 = scalar_select %p187, %s188, %s189
      %p193 = pneg %p187
      %p194 = scmp.eq.s32.totalorder %s36, 3
      %p195 = por %p193, %p194
      %p196 = scmp.ne.s32.totalorder %s188, %s191
      %p197 = scmp.eq.s32.totalorder %s36, 0
      %p198 = por %p196, %p197
      %p199 = scmp.ne.s32.totalorder %s188, %s191
      %p200 = scmp.eq.s32.totalorder %s41, 3
      %p201 = por %p199, %p200
      %p202 = scmp.ne.s32.totalorder %s191, %s192
      %p203 = scmp.eq.s32.totalorder %s41, 0
      %p204 = por %p202, %p203
      %p205 = scmp.ne.s32.totalorder %s191, %s192
      %p206 = scmp.eq.s32.totalorder %s42, 3
      %p207 = por %p205, %p206
      %p209 = scmp.ne.s32.totalorder %s192, %s208
      %p210 = scmp.eq.s32.totalorder %s42, 0
      %p211 = por %p209, %p210
      %s212 = ssub.s32 %s44, %s51
      %p213 = scmp.eq.s32.totalorder %s212, 0
      %s215 = sadd.s32 %s214, 1
      %s216 = scalar_select %p213, %s214, %s215
      %p219 = pneg %p213
      %p220 = scmp.eq.s32.totalorder %s36, 3
      %p221 = por %p219, %p220
      %p222 = scmp.ne.s32.totalorder %s214, %s217
      %p223 = scmp.eq.s32.totalorder %s36, 0
      %p224 = por %p222, %p223
      %p225 = scmp.ne.s32.totalorder %s214, %s217
      %p226 = scmp.eq.s32.totalorder %s41, 3
      %p227 = por %p225, %p226
      %p228 = scmp.ne.s32.totalorder %s217, %s218
      %p229 = scmp.eq.s32.totalorder %s41, 0
      %p230 = por %p228, %p229
      %p231 = scmp.ne.s32.totalorder %s217, %s218
      %p232 = scmp.eq.s32.totalorder %s42, 3
      %p233 = por %p231, %p232
      %p235 = scmp.ne.s32.totalorder %s218, %s234
      %p236 = scmp.eq.s32.totalorder %s42, 0
      %p237 = por %p235, %p236
      %s238 = ssub.s32 %s44, %s51
      %p239 = scmp.eq.s32.totalorder %s238, 0
      %s241 = sadd.s32 %s240, 1
      %s242 = scalar_select %p239, %s240, %s241
      %p245 = pneg %p239
      %p246 = scmp.eq.s32.totalorder %s36, 3
      %p247 = por %p245, %p246
      %p248 = scmp.ne.s32.totalorder %s240, %s243
      %p249 = scmp.eq.s32.totalorder %s36, 0
      %p250 = por %p248, %p249
      %p251 = scmp.ne.s32.totalorder %s240, %s243
      %p252 = scmp.eq.s32.totalorder %s41, 3
      %p253 = por %p251, %p252
      %p254 = scmp.ne.s32.totalorder %s243, %s244
      %p255 = scmp.eq.s32.totalorder %s41, 0
      %p256 = por %p254, %p255
      %p257 = scmp.ne.s32.totalorder %s243, %s244
      %p258 = scmp.eq.s32.totalorder %s42, 3
      %p259 = por %p257, %p258
      %p261 = scmp.ne.s32.totalorder %s244, %s260
      %p262 = scmp.eq.s32.totalorder %s42, 0
      %p263 = por %p261, %p262
      %s264 = ssub.s32 %s44, %s51
      %p265 = scmp.eq.s32.totalorder %s264, 0
      %s267 = sadd.s32 %s266, 1
      %s268 = scalar_select %p265, %s266, %s267
      %p271 = pneg %p265
      %p272 = scmp.eq.s32.totalorder %s36, 3
      %p273 = por %p271, %p272
      %p274 = scmp.ne.s32.totalorder %s266, %s269
      %p275 = scmp.eq.s32.totalorder %s36, 0
      %p276 = por %p274, %p275
      %p277 = scmp.ne.s32.totalorder %s266, %s269
      %p278 = scmp.eq.s32.totalorder %s41, 3
      %p279 = por %p277, %p278
      %p280 = scmp.ne.s32.totalorder %s269, %s270
      %p281 = scmp.eq.s32.totalorder %s41, 0
      %p282 = por %p280, %p281
      %p283 = scmp.ne.s32.totalorder %s269, %s270
      %p284 = scmp.eq.s32.totalorder %s42, 3
      %p285 = por %p283, %p284
      %p287 = scmp.ne.s32.totalorder %s270, %s286
      %p288 = scmp.eq.s32.totalorder %s42, 0
      %p289 = por %p287, %p288
      %s290 = ssub.s32 %s44, %s51
      %p291 = scmp.eq.s32.totalorder %s290, 0
      %s293 = sadd.s32 %s292, 1
      %s294 = scalar_select %p291, %s292, %s293
      %p297 = pneg %p291
      %p298 = scmp.eq.s32.totalorder %s36, 3
      %p299 = por %p297, %p298
      %p300 = scmp.ne.s32.totalorder %s292, %s295
      %p301 = scmp.eq.s32.totalorder %s36, 0
      %p302 = por %p300, %p301
      %p303 = scmp.ne.s32.totalorder %s292, %s295
      %p304 = scmp.eq.s32.totalorder %s41, 3
      %p305 = por %p303, %p304
      %p306 = scmp.ne.s32.totalorder %s295, %s296
      %p307 = scmp.eq.s32.totalorder %s41, 0
      %p308 = por %p306, %p307
      %p309 = scmp.ne.s32.totalorder %s295, %s296
      %p310 = scmp.eq.s32.totalorder %s42, 3
      %p311 = por %p309, %p310
      %p313 = scmp.ne.s32.totalorder %s296, %s312
      %p314 = scmp.eq.s32.totalorder %s42, 0
      %p315 = por %p313, %p314
      %s316 = ssub.s32 %s44, %s51
      %p317 = scmp.eq.s32.totalorder %s316, 0
      %s319 = sadd.s32 %s318, 1
      %s320 = scalar_select %p317, %s318, %s319
      %p323 = pneg %p317
      %p324 = scmp.eq.s32.totalorder %s36, 3
      %p325 = por %p323, %p324
      %p326 = scmp.ne.s32.totalorder %s318, %s321
      %p327 = scmp.eq.s32.totalorder %s36, 0
      %p328 = por %p326, %p327
      %p329 = scmp.ne.s32.totalorder %s318, %s321
      %p330 = scmp.eq.s32.totalorder %s41, 3
      %p331 = por %p329, %p330
      %p332 = scmp.ne.s32.totalorder %s321, %s322
      %p333 = scmp.eq.s32.totalorder %s41, 0
      %p334 = por %p332, %p333
      %p335 = scmp.ne.s32.totalorder %s321, %s322
      %p336 = scmp.eq.s32.totalorder %s42, 3
      %p337 = por %p335, %p336
      %p339 = scmp.ne.s32.totalorder %s322, %s338
      %p340 = scmp.eq.s32.totalorder %s42, 0
      %p341 = por %p339, %p340
      %s342 = ssub.s32 %s44, %s51
      %p343 = scmp.eq.s32.totalorder %s342, 0
      %s345 = sadd.s32 %s344, 1
      %s346 = scalar_select %p343, %s344, %s345
      %p349 = pneg %p343
      %p350 = scmp.eq.s32.totalorder %s36, 3
      %p351 = por %p349, %p350
      %p352 = scmp.ne.s32.totalorder %s344, %s347
      %p353 = scmp.eq.s32.totalorder %s36, 0
      %p354 = por %p352, %p353
      %p355 = scmp.ne.s32.totalorder %s344, %s347
      %p356 = scmp.eq.s32.totalorder %s41, 3
      %p357 = por %p355, %p356
      %p358 = scmp.ne.s32.totalorder %s347, %s348
      %p359 = scmp.eq.s32.totalorder %s41, 0
      %p360 = por %p358, %p359
      %p361 = scmp.ne.s32.totalorder %s347, %s348
      %p362 = scmp.eq.s32.totalorder %s42, 3
      %p363 = por %p361, %p362
      %p365 = scmp.ne.s32.totalorder %s348, %s364
      %p366 = scmp.eq.s32.totalorder %s42, 0
      %p367 = por %p365, %p366
      %s368 = ssub.s32 %s44, %s51
      %p369 = scmp.eq.s32.totalorder %s368, 0
      %s371 = sadd.s32 %s370, 1
      %s372 = scalar_select %p369, %s370, %s371
      %p375 = pneg %p369
      %p376 = scmp.eq.s32.totalorder %s36, 3
      %p377 = por %p375, %p376
      %p378 = scmp.ne.s32.totalorder %s370, %s373
      %p379 = scmp.eq.s32.totalorder %s36, 0
      %p380 = por %p378, %p379
      %p381 = scmp.ne.s32.totalorder %s370, %s373
      %p382 = scmp.eq.s32.totalorder %s41, 3
      %p383 = por %p381, %p382
      %p384 = scmp.ne.s32.totalorder %s373, %s374
      %p385 = scmp.eq.s32.totalorder %s41, 0
      %p386 = por %p384, %p385
      %p387 = scmp.ne.s32.totalorder %s373, %s374
      %p388 = scmp.eq.s32.totalorder %s42, 3
      %p389 = por %p387, %p388
      %p391 = scmp.ne.s32.totalorder %s374, %s390
      %p392 = scmp.eq.s32.totalorder %s42, 0
      %p393 = por %p391, %p392
      %s394 = ssub.s32 %s44, %s51
      %p395 = scmp.eq.s32.totalorder %s394, 0
      %s397 = sadd.s32 %s396, 1
      %s398 = scalar_select %p395, %s396, %s397
      %p401 = pneg %p395
      %p402 = scmp.eq.s32.totalorder %s36, 3
      %p403 = por %p401, %p402
      %p404 = scmp.ne.s32.totalorder %s396, %s399
      %p405 = scmp.eq.s32.totalorder %s36, 0
      %p406 = por %p404, %p405
      %p407 = scmp.ne.s32.totalorder %s396, %s399
      %p408 = scmp.eq.s32.totalorder %s41, 3
      %p409 = por %p407, %p408
      %p410 = scmp.ne.s32.totalorder %s399, %s400
      %p411 = scmp.eq.s32.totalorder %s41, 0
      %p412 = por %p410, %p411
      %p413 = scmp.ne.s32.totalorder %s399, %s400
      %p414 = scmp.eq.s32.totalorder %s42, 3
      %p415 = por %p413, %p414
      %p417 = scmp.ne.s32.totalorder %s400, %s416
      %p418 = scmp.eq.s32.totalorder %s42, 0
      %p419 = por %p417, %p418
      %s420 = ssub.s32 %s44, %s51
      %p421 = scmp.eq.s32.totalorder %s420, 0
      %s423 = sadd.s32 %s422, 1
      %s424 = scalar_select %p421, %s422, %s423
      %p427 = pneg %p421
      %p428 = scmp.eq.s32.totalorder %s36, 3
      %p429 = por %p427, %p428
      %p430 = scmp.ne.s32.totalorder %s422, %s425
      %p431 = scmp.eq.s32.totalorder %s36, 0
      %p432 = por %p430, %p431
      %p433 = scmp.ne.s32.totalorder %s422, %s425
      %p434 = scmp.eq.s32.totalorder %s41, 3
      %p435 = por %p433, %p434
      %p436 = scmp.ne.s32.totalorder %s425, %s426
      %p437 = scmp.eq.s32.totalorder %s41, 0
      %p438 = por %p436, %p437
      %p439 = scmp.ne.s32.totalorder %s425, %s426
      %p440 = scmp.eq.s32.totalorder %s42, 3
      %p441 = por %p439, %p440
      %p443 = scmp.ne.s32.totalorder %s426, %s442
      %p444 = scmp.eq.s32.totalorder %s42, 0
      %p445 = por %p443, %p444
      %s447 = sadd.s32 %s446, 1
      %p450 = scmp.eq.s32.totalorder %s36, 3
      %p451 = scmp.ne.s32.totalorder %s446, %s448
      %p452 = scmp.eq.s32.totalorder %s36, 0
      %p453 = por %p451, %p452
      %p454 = scmp.ne.s32.totalorder %s446, %s448
      %p455 = scmp.eq.s32.totalorder %s41, 3
      %p456 = por %p454, %p455
      %p457 = scmp.ne.s32.totalorder %s448, %s449
      %p458 = scmp.eq.s32.totalorder %s41, 0
      %p459 = por %p457, %p458
      %p460 = scmp.ne.s32.totalorder %s448, %s449
      %p461 = scmp.eq.s32.totalorder %s42, 3
      %p462 = por %p460, %p461
      %p464 = scmp.ne.s32.totalorder %s449, %s463
      %p465 = scmp.eq.s32.totalorder %s42, 0
      %p466 = por %p464, %p465
      %s468 = sadd.s32 %s467, 1
      %p471 = scmp.eq.s32.totalorder %s36, 3
      %p472 = scmp.ne.s32.totalorder %s467, %s469
      %p473 = scmp.eq.s32.totalorder %s36, 0
      %p474 = por %p472, %p473
      %p475 = scmp.ne.s32.totalorder %s467, %s469
      %p476 = scmp.eq.s32.totalorder %s41, 3
      %p477 = por %p475, %p476
      %p478 = scmp.ne.s32.totalorder %s469, %s470
      %p479 = scmp.eq.s32.totalorder %s41, 0
      %p480 = por %p478, %p479
      %p481 = scmp.ne.s32.totalorder %s469, %s470
      %p482 = scmp.eq.s32.totalorder %s42, 3
      %p483 = por %p481, %p482
      %p485 = scmp.ne.s32.totalorder %s470, %s484
      %p486 = scmp.eq.s32.totalorder %s42, 0
      %p487 = por %p485, %p486
      %s488 = ssub.s32 %s43, %s55
      %p489 = scmp.eq.s32.totalorder %s488, 0
      %s491 = sadd.s32 %s490, 1
      %s492 = scalar_select %p489, %s490, %s491
      %p495 = pneg %p489
      %p496 = scmp.eq.s32.totalorder %s36, 3
      %p497 = por %p495, %p496
      %p498 = scmp.ne.s32.totalorder %s490, %s493
      %p499 = scmp.eq.s32.totalorder %s36, 0
      %p500 = por %p498, %p499
      %p501 = scmp.ne.s32.totalorder %s490, %s493
      %p502 = scmp.eq.s32.totalorder %s41, 3
      %p503 = por %p501, %p502
      %p504 = scmp.ne.s32.totalorder %s493, %s494
      %p505 = scmp.eq.s32.totalorder %s41, 0
      %p506 = por %p504, %p505
      %p507 = scmp.ne.s32.totalorder %s493, %s494
      %p508 = scmp.eq.s32.totalorder %s42, 3
      %p509 = por %p507, %p508
      %p511 = scmp.ne.s32.totalorder %s494, %s510
      %p512 = scmp.eq.s32.totalorder %s42, 0
      %p513 = por %p511, %p512
      %p514 = scmp.le.s32.totalorder 1, %s36
      %p515 = scmp.lt.s32.totalorder %s36, 5
      %p516 = pnand %p514, %p515
      %p517 = pneg %p516
      // Predicated region
      $region9: #{tpu_custom_call.1} parent=5 // pred_check
        _
      $region10: #{tpu_custom_call.1} parent=5 // pred_check_branch
        %519 = sbr.rel (%p516) target = $region12
      $region11: #{tpu_custom_call.1} parent=5 // pred_region
        %s520 = ssub.s32 %s36, 1
        // Predicated region
        $region13: #{tpu_custom_call.1} parent=11 // pred_check
          %p521 = pneg %p459
        $region14: #{tpu_custom_call.1} parent=11 // pred_check_branch
          %523 = sbr.rel (%p521) target = $region16
        $region15: #{tpu_custom_call.1} parent=11 // pred_region
          %525 = vsyncadd [#allocation13], 0
          %s526 = sshll.u32 %s15, 4
          %s527 = int_to_ptr.hbm [resolvable:$true] %s526
          %s528 = sshll.u32 [#allocation12], 4
          %s529 = int_to_ptr.vmem [resolvable:$true] %s528
          %534 = dma.hbm_to_vmem [thread:$0]  %s527, 256, %s529, [#allocation13], 64, 64, 4
        $region16: #{tpu_custom_call.1} parent=11 // pred_fallthru
          _
        // Predicated region
        $region17: #{tpu_custom_call.1} parent=11 // pred_check
          %p535 = pneg %p480
        $region18: #{tpu_custom_call.1} parent=11 // pred_check_branch
          %537 = sbr.rel (%p535) target = $region20
        $region19: #{tpu_custom_call.1} parent=11 // pred_region
          _
        $region20: #{tpu_custom_call.1} parent=11 // pred_fallthru
          _
      $region12: #{tpu_custom_call.1} parent=5 // pred_fallthru
        _
      %p538 = scmp.lt.s32.totalorder %s36, 4
      // Predicated region
      $region21: #{tpu_custom_call.1} parent=5 // pred_check
        %p539 = pneg %p538
      $region22: #{tpu_custom_call.1} parent=5 // pred_check_branch
        %541 = sbr.rel (%p539) target = $region24
      $region23: #{tpu_custom_call.1} parent=5 // pred_region
        // Predicated region
        $region25: #{tpu_custom_call.1} parent=23 // pred_check
          %p542 = pneg %p68
        $region26: #{tpu_custom_call.1} parent=23 // pred_check_branch
          %544 = sbr.rel (%p542) target = $region28
        $region27: #{tpu_custom_call.1} parent=23 // pred_region
          %s545 = sand.u32 %s58, 1
          %s546 = scalar_lea.sflag [#allocation4], %s545
          %s547 = sand.u32 %s58, 1
          %s548 = smul.addr %s547, 8
          %s549 = scalar_lea.vmem [#allocation3], %s548
          %551 = vsyncadd %s546, 0
          %s552 = smul.addr %s43, 8
          %s553 = scalar_lea.hbm %s0, %s552
          %s555 = sshll.u32 %s553, 4
          %s556 = int_to_ptr.hbm [resolvable:$true] %s555
          %s557 = sshll.u32 %s549, 4
          %s558 = int_to_ptr.vmem [resolvable:$true] %s557
          %560 = dma.hbm_to_vmem [thread:$0]  %s556, 128, %s558, %s546
        $region28: #{tpu_custom_call.1} parent=23 // pred_fallthru
          _
        // Predicated region
        $region29: #{tpu_custom_call.1} parent=23 // pred_check
          %p561 = pneg %p94
        $region30: #{tpu_custom_call.1} parent=23 // pred_check_branch
          %563 = sbr.rel (%p561) target = $region32
        $region31: #{tpu_custom_call.1} parent=23 // pred_region
          %s564 = sand.u32 %s36, 1
          %s565 = scalar_lea.sflag [#allocation7], %s564
          %s566 = sand.u32 %s84, 1
          %s567 = scalar_lea.vmem [#allocation6], %s566
          %569 = vsyncadd %s565, 0
          %s570 = scalar_lea.hbm %s1, %s43
          %s572 = sshll.u32 %s570, 4
          %s573 = int_to_ptr.hbm [resolvable:$true] %s572
          %s574 = sshll.u32 %s567, 4
          %s575 = int_to_ptr.vmem [resolvable:$true] %s574
          %577 = dma.hbm_to_vmem [thread:$0]  %s573, 16, %s575, %s565
        $region32: #{tpu_custom_call.1} parent=23 // pred_fallthru
          _
        // Predicated region
        $region33: #{tpu_custom_call.1} parent=23 // pred_check
          %p578 = pneg %p120
        $region34: #{tpu_custom_call.1} parent=23 // pred_check_branch
          %580 = sbr.rel (%p578) target = $region36
        $region35: #{tpu_custom_call.1} parent=23 // pred_region
          %s581 = sand.u32 %s36, 1
          %s582 = scalar_lea.sflag [#allocation7], %s581
          %s583 = sand.u32 %s110, 1
          %s584 = smul.addr %s583, 8
          %s585 = scalar_lea.vmem [#allocation8], %s584
          %587 = vsyncadd %s582, 0
          %s588 = smul.addr %s43, 8
          %s589 = scalar_lea.hbm %s2, %s588
          %s591 = sshll.u32 %s589, 4
          %s592 = int_to_ptr.hbm [resolvable:$true] %s591
          %s593 = sshll.u32 %s585, 4
          %s594 = int_to_ptr.vmem [resolvable:$true] %s593
          %596 = dma.hbm_to_vmem [thread:$0]  %s592, 128, %s594, %s582
        $region36: #{tpu_custom_call.1} parent=23 // pred_fallthru
          _
        // Predicated region
        $region37: #{tpu_custom_call.1} parent=23 // pred_check
          %p597 = pneg %p146
        $region38: #{tpu_custom_call.1} parent=23 // pred_check_branch
          %599 = sbr.rel (%p597) target = $region40
        $region39: #{tpu_custom_call.1} parent=23 // pred_region
          %p600 = scmp.lt.s32.totalorder %s44, 1
          %s601 = scalar_select %p600, %s44, 1
          %s602 = smul.addr %s601, 4
          %s603 = smul.addr %s602, 4
          %s604 = scalar_lea.vmem %s3, %s603
        $region40: #{tpu_custom_call.1} parent=23 // pred_fallthru
          _
        // Predicated region
        $region41: #{tpu_custom_call.1} parent=23 // pred_check
          %p605 = pneg %p172
        $region42: #{tpu_custom_call.1} parent=23 // pred_check_branch
          %607 = sbr.rel (%p605) target = $region44
        $region43: #{tpu_custom_call.1} parent=23 // pred_region
          %p608 = scmp.lt.s32.totalorder %s44, 1
          %s609 = scalar_select %p608, %s44, 1
          %s610 = scalar_lea.vmem %s4, %s609
        $region44: #{tpu_custom_call.1} parent=23 // pred_fallthru
          _
        // Predicated region
        $region45: #{tpu_custom_call.1} parent=23 // pred_check
          %p611 = pneg %p198
        $region46: #{tpu_custom_call.1} parent=23 // pred_check_branch
          %613 = sbr.rel (%p611) target = $region48
        $region47: #{tpu_custom_call.1} parent=23 // pred_region
          %p614 = scmp.lt.s32.totalorder %s44, 1
          %s615 = scalar_select %p614, %s44, 1
          %s616 = smul.addr %s615, 4
          %s617 = smul.addr %s616, 4
          %s618 = scalar_lea.vmem %s5, %s617
        $region48: #{tpu_custom_call.1} parent=23 // pred_fallthru
          _
        // Predicated region
        $region49: #{tpu_custom_call.1} parent=23 // pred_check
          %p619 = pneg %p224
        $region50: #{tpu_custom_call.1} parent=23 // pred_check_branch
          %621 = sbr.rel (%p619) target = $region52
        $region51: #{tpu_custom_call.1} parent=23 // pred_region
          %p622 = scmp.lt.s32.totalorder %s44, 1
          %s623 = scalar_select %p622, %s44, 1
          %s624 = scalar_lea.vmem %s6, %s623
        $region52: #{tpu_custom_call.1} parent=23 // pred_fallthru
          _
        // Predicated region
        $region53: #{tpu_custom_call.1} parent=23 // pred_check
          %p625 = pneg %p250
        $region54: #{tpu_custom_call.1} parent=23 // pred_check_branch
          %627 = sbr.rel (%p625) target = $region56
        $region55: #{tpu_custom_call.1} parent=23 // pred_region
          %s628 = sand.u32 %s36, 1
          %s629 = scalar_lea.sflag [#allocation10], %s628
          %s630 = sand.u32 %s240, 1
          %s631 = scalar_lea.vmem [#allocation9], %s630
          %633 = vsyncadd %s629, 0
          %s634 = scalar_lea.hbm %s7, %s44
          %s636 = sshll.u32 %s634, 4
          %s637 = int_to_ptr.hbm [resolvable:$true] %s636
          %s638 = sshll.u32 %s631, 4
          %s639 = int_to_ptr.vmem [resolvable:$true] %s638
          %641 = dma.hbm_to_vmem [thread:$0]  %s637, 16, %s639, %s629
        $region56: #{tpu_custom_call.1} parent=23 // pred_fallthru
          _
        // Predicated region
        $region57: #{tpu_custom_call.1} parent=23 // pred_check
          %p642 = pneg %p276
        $region58: #{tpu_custom_call.1} parent=23 // pred_check_branch
          %644 = sbr.rel (%p642) target = $region60
        $region59: #{tpu_custom_call.1} parent=23 // pred_region
          %p645 = scmp.lt.s32.totalorder %s44, 1
          %s646 = scalar_select %p645, %s44, 1
          %s647 = scalar_lea.vmem %s8, %s646
        $region60: #{tpu_custom_call.1} parent=23 // pred_fallthru
          _
        // Predicated region
        $region61: #{tpu_custom_call.1} parent=23 // pred_check
          %p648 = pneg %p302
        $region62: #{tpu_custom_call.1} parent=23 // pred_check_branch
          %650 = sbr.rel (%p648) target = $region64
        $region63: #{tpu_custom_call.1} parent=23 // pred_region
          %p651 = scmp.lt.s32.totalorder %s44, 1
          %s652 = scalar_select %p651, %s44, 1
          %s653 = smul.addr %s652, 4
          %s654 = smul.addr %s653, 4
          %s655 = scalar_lea.vmem %s9, %s654
        $region64: #{tpu_custom_call.1} parent=23 // pred_fallthru
          _
        // Predicated region
        $region65: #{tpu_custom_call.1} parent=23 // pred_check
          %p656 = pneg %p328
        $region66: #{tpu_custom_call.1} parent=23 // pred_check_branch
          %658 = sbr.rel (%p656) target = $region68
        $region67: #{tpu_custom_call.1} parent=23 // pred_region
          %p659 = scmp.lt.s32.totalorder %s44, 1
          %s660 = scalar_select %p659, %s44, 1
          %s661 = scalar_lea.vmem %s10, %s660
        $region68: #{tpu_custom_call.1} parent=23 // pred_fallthru
          _
        // Predicated region
        $region69: #{tpu_custom_call.1} parent=23 // pred_check
          %p662 = pneg %p354
        $region70: #{tpu_custom_call.1} parent=23 // pred_check_branch
          %664 = sbr.rel (%p662) target = $region72
        $region71: #{tpu_custom_call.1} parent=23 // pred_region
          %p665 = scmp.lt.s32.totalorder %s44, 1
          %s666 = scalar_select %p665, %s44, 1
          %s667 = smul.addr %s666, 8
          %s668 = smul.addr %s667, 4
          %s669 = scalar_lea.vmem %s11, %s668
        $region72: #{tpu_custom_call.1} parent=23 // pred_fallthru
          _
        // Predicated region
        $region73: #{tpu_custom_call.1} parent=23 // pred_check
          %p670 = pneg %p380
        $region74: #{tpu_custom_call.1} parent=23 // pred_check_branch
          %672 = sbr.rel (%p670) target = $region76
        $region75: #{tpu_custom_call.1} parent=23 // pred_region
          %p673 = scmp.lt.s32.totalorder %s44, 1
          %s674 = scalar_select %p673, %s44, 1
          %s675 = scalar_lea.vmem %s12, %s674
        $region76: #{tpu_custom_call.1} parent=23 // pred_fallthru
          _
        // Predicated region
        $region77: #{tpu_custom_call.1} parent=23 // pred_check
          %p676 = pneg %p406
        $region78: #{tpu_custom_call.1} parent=23 // pred_check_branch
          %678 = sbr.rel (%p676) target = $region80
        $region79: #{tpu_custom_call.1} parent=23 // pred_region
          %s679 = sand.u32 %s36, 1
          %s680 = scalar_lea.sflag [#allocation10], %s679
          %s681 = sand.u32 %s396, 1
          %s682 = scalar_lea.vmem [#allocation11], %s681
          %684 = vsyncadd %s680, 0
          %s685 = scalar_lea.hbm %s13, %s44
          %s687 = sshll.u32 %s685, 4
          %s688 = int_to_ptr.hbm [resolvable:$true] %s687
          %s689 = sshll.u32 %s682, 4
          %s690 = int_to_ptr.vmem [resolvable:$true] %s689
          %692 = dma.hbm_to_vmem [thread:$0]  %s688, 16, %s690, %s680
        $region80: #{tpu_custom_call.1} parent=23 // pred_fallthru
          _
        // Predicated region
        $region81: #{tpu_custom_call.1} parent=23 // pred_check
          %p693 = pneg %p432
        $region82: #{tpu_custom_call.1} parent=23 // pred_check_branch
          %695 = sbr.rel (%p693) target = $region84
        $region83: #{tpu_custom_call.1} parent=23 // pred_region
          %p696 = scmp.lt.s32.totalorder %s44, 1
          %s697 = scalar_select %p696, %s44, 1
          %s698 = scalar_lea.vmem %s14, %s697
        $region84: #{tpu_custom_call.1} parent=23 // pred_fallthru
          _
      $region24: #{tpu_custom_call.1} parent=5 // pred_fallthru
        _
      %p699 = scmp.le.s32.totalorder 1, %s36
      %p700 = scmp.lt.s32.totalorder %s36, 5
      %p701 = pnand %p699, %p700
      %p702 = pneg %p701
      // Predicated region
      $region85: #{tpu_custom_call.1} parent=5 // pred_check
        _
      $region86: #{tpu_custom_call.1} parent=5 // pred_check_branch
        %704 = sbr.rel (%p701) target = $region88
      $region87: #{tpu_custom_call.1} parent=5 // pred_region
        %s705 = ssub.s32 %s36, 1
        %s706 = sand.u32 %s61, 1
        %s707 = scalar_lea.sflag [#allocation4], %s706
        %s708 = sand.u32 %s61, 1
        %s709 = smul.addr %s708, 8
        %s710 = scalar_lea.vmem [#allocation3], %s709
        // Predicated region
        $region89: #{tpu_custom_call.1} parent=87 // pred_check
          %p711 = pneg %p74
        $region90: #{tpu_custom_call.1} parent=87 // pred_check_branch
          %713 = sbr.rel (%p711) target = $region92
        $region91: #{tpu_custom_call.1} parent=87 // pred_region
          %715 = dma.done %s707, 128
        $region92: #{tpu_custom_call.1} parent=87 // pred_fallthru
          _
        %s716 = sand.u32 %s41, 1
        %s717 = scalar_lea.sflag [#allocation7], %s716
        %s718 = sand.u32 %s87, 1
        %s719 = scalar_lea.vmem [#allocation6], %s718
        // Predicated region
        $region93: #{tpu_custom_call.1} parent=87 // pred_check
          %p720 = pneg %p100
        $region94: #{tpu_custom_call.1} parent=87 // pred_check_branch
          %722 = sbr.rel (%p720) target = $region96
        $region95: #{tpu_custom_call.1} parent=87 // pred_region
          %724 = dma.done %s717, 16
        $region96: #{tpu_custom_call.1} parent=87 // pred_fallthru
          _
        %s725 = sand.u32 %s41, 1
        %s726 = scalar_lea.sflag [#allocation7], %s725
        %s727 = sand.u32 %s113, 1
        %s728 = smul.addr %s727, 8
        %s729 = scalar_lea.vmem [#allocation8], %s728
        // Predicated region
        $region97: #{tpu_custom_call.1} parent=87 // pred_check
          %p730 = pneg %p126
        $region98: #{tpu_custom_call.1} parent=87 // pred_check_branch
          %732 = sbr.rel (%p730) target = $region100
        $region99: #{tpu_custom_call.1} parent=87 // pred_region
          %734 = dma.done %s726, 128
        $region100: #{tpu_custom_call.1} parent=87 // pred_fallthru
          _
        %s735 = sand.u32 %s41, 1
        %s736 = scalar_lea.sflag [#allocation10], %s735
        %s737 = sand.u32 %s243, 1
        %s738 = scalar_lea.vmem [#allocation9], %s737
        // Predicated region
        $region101: #{tpu_custom_call.1} parent=87 // pred_check
          %p739 = pneg %p256
        $region102: #{tpu_custom_call.1} parent=87 // pred_check_branch
          %741 = sbr.rel (%p739) target = $region104
        $region103: #{tpu_custom_call.1} parent=87 // pred_region
          %743 = dma.done %s736, 16
        $region104: #{tpu_custom_call.1} parent=87 // pred_fallthru
          _
        %s744 = sand.u32 %s41, 1
        %s745 = scalar_lea.sflag [#allocation10], %s744
        %s746 = sand.u32 %s399, 1
        %s747 = scalar_lea.vmem [#allocation11], %s746
        // Predicated region
        $region105: #{tpu_custom_call.1} parent=87 // pred_check
          %p748 = pneg %p412
        $region106: #{tpu_custom_call.1} parent=87 // pred_check_branch
          %750 = sbr.rel (%p748) target = $region108
        $region107: #{tpu_custom_call.1} parent=87 // pred_region
          %752 = dma.done %s745, 16
        $region108: #{tpu_custom_call.1} parent=87 // pred_fallthru
          _
        // Predicated region
        $region109: #{tpu_custom_call.1} parent=87 // pred_check
          %p753 = pneg %p459
        $region110: #{tpu_custom_call.1} parent=87 // pred_check_branch
          %755 = sbr.rel (%p753) target = $region112
        $region111: #{tpu_custom_call.1} parent=87 // pred_region
          %757 = dma.done [#allocation13], 256
        $region112: #{tpu_custom_call.1} parent=87 // pred_fallthru
          _
        %s758 = sand.u32 %s61, 1
        %s759 = scalar_lea.sflag [#allocation4], %s758
        %s760 = sand.u32 %s61, 1
        %s761 = smul.addr %s760, 8
        %s762 = scalar_lea.vmem [#allocation3], %s761
        %p763 = pneg %p74
        %p764 = pneg %p71
        %s765 = sand.u32 %s41, 1
        %s766 = scalar_lea.sflag [#allocation7], %s765
        %s767 = sand.u32 %s87, 1
        %s768 = scalar_lea.vmem [#allocation6], %s767
        %p769 = pneg %p100
        %p770 = pneg %p97
        %s771 = sand.u32 %s41, 1
        %s772 = scalar_lea.sflag [#allocation7], %s771
        %s773 = sand.u32 %s113, 1
        %s774 = smul.addr %s773, 8
        %s775 = scalar_lea.vmem [#allocation8], %s774
        %p776 = pneg %p126
        %p777 = pneg %p123
        %p778 = scmp.lt.s32.totalorder %s46, 1
        %s779 = scalar_select %p778, %s46, 1
        %s780 = smul.addr %s779, 4
        %s781 = smul.addr %s780, 4
        %s782 = scalar_lea.vmem %s3, %s781
        %p783 = pneg %p152
        %p784 = pneg %p149
        %p785 = scmp.lt.s32.totalorder %s46, 1
        %s786 = scalar_select %p785, %s46, 1
        %s787 = scalar_lea.vmem %s4, %s786
        %p788 = pneg %p178
        %p789 = pneg %p175
        %p790 = scmp.lt.s32.totalorder %s46, 1
        %s791 = scalar_select %p790, %s46, 1
        %s792 = smul.addr %s791, 4
        %s793 = smul.addr %s792, 4
        %s794 = scalar_lea.vmem %s5, %s793
        %p795 = pneg %p204
        %p796 = pneg %p201
        %p797 = scmp.lt.s32.totalorder %s46, 1
        %s798 = scalar_select %p797, %s46, 1
        %s799 = scalar_lea.vmem %s6, %s798
        %p800 = pneg %p230
        %p801 = pneg %p227
        %s802 = sand.u32 %s41, 1
        %s803 = scalar_lea.sflag [#allocation10], %s802
        %s804 = sand.u32 %s243, 1
        %s805 = scalar_lea.vmem [#allocation9], %s804
        %p806 = pneg %p256
        %p807 = pneg %p253
        %p808 = scmp.lt.s32.totalorder %s46, 1
        %s809 = scalar_select %p808, %s46, 1
        %s810 = scalar_lea.vmem %s8, %s809
        %p811 = pneg %p282
        %p812 = pneg %p279
        %p813 = scmp.lt.s32.totalorder %s46, 1
        %s814 = scalar_select %p813, %s46, 1
        %s815 = smul.addr %s814, 4
        %s816 = smul.addr %s815, 4
        %s817 = scalar_lea.vmem %s9, %s816
        %p818 = pneg %p308
        %p819 = pneg %p305
        %p820 = scmp.lt.s32.totalorder %s46, 1
        %s821 = scalar_select %p820, %s46, 1
        %s822 = scalar_lea.vmem %s10, %s821
        %p823 = pneg %p334
        %p824 = pneg %p331
        %p825 = scmp.lt.s32.totalorder %s46, 1
        %s826 = scalar_select %p825, %s46, 1
        %s827 = smul.addr %s826, 8
        %s828 = smul.addr %s827, 4
        %s829 = scalar_lea.vmem %s11, %s828
        %p830 = pneg %p360
        %p831 = pneg %p357
        %p832 = scmp.lt.s32.totalorder %s46, 1
        %s833 = scalar_select %p832, %s46, 1
        %s834 = scalar_lea.vmem %s12, %s833
        %p835 = pneg %p386
        %p836 = pneg %p383
        %s837 = sand.u32 %s41, 1
        %s838 = scalar_lea.sflag [#allocation10], %s837
        %s839 = sand.u32 %s399, 1
        %s840 = scalar_lea.vmem [#allocation11], %s839
        %p841 = pneg %p412
        %p842 = pneg %p409
        %p843 = scmp.lt.s32.totalorder %s46, 1
        %s844 = scalar_select %p843, %s46, 1
        %s845 = scalar_lea.vmem %s14, %s844
        %p846 = pneg %p438
        %p847 = pneg %p435
        %p848 = pneg %p459
        %p849 = pneg %p456
        %p850 = pneg %p480
        %p851 = pneg %p477
        %p852 = pneg %p506
        %p853 = pneg %p503
        %s854 = sand.u32 %s493, 1
        %s855 = scalar_lea.sflag [#allocation5], %s854
        %s856 = sand.u32 %s493, 1
        %s857 = smul.addr %s856, 8
        %s858 = scalar_lea.vmem [#allocation14], %s857
        %p859 = scmp.lt.s32.totalorder %s46, 1
        %s860 = scalar_select %p859, %s46, 1
        %s861 = smul.addr %s860, 4
        %s862 = smul.addr %s861, 4
        %s863 = scalar_lea.vmem %s3, %s862
        %p864 = scmp.lt.s32.totalorder %s46, 1
        %s865 = scalar_select %p864, %s46, 1
        %s866 = scalar_lea.vmem %s4, %s865
        %p867 = scmp.lt.s32.totalorder %s46, 1
        %s868 = scalar_select %p867, %s46, 1
        %s869 = smul.addr %s868, 4
        %s870 = smul.addr %s869, 4
        %s871 = scalar_lea.vmem %s5, %s870
        %p872 = scmp.lt.s32.totalorder %s46, 1
        %s873 = scalar_select %p872, %s46, 1
        %s874 = scalar_lea.vmem %s6, %s873
        %p875 = scmp.lt.s32.totalorder %s46, 1
        %s876 = scalar_select %p875, %s46, 1
        %s877 = scalar_lea.vmem %s8, %s876
        %p878 = scmp.lt.s32.totalorder %s46, 1
        %s879 = scalar_select %p878, %s46, 1
        %s880 = smul.addr %s879, 4
        %s881 = smul.addr %s880, 4
        %s882 = scalar_lea.vmem %s9, %s881
        %p883 = scmp.lt.s32.totalorder %s46, 1
        %s884 = scalar_select %p883, %s46, 1
        %s885 = scalar_lea.vmem %s10, %s884
        %p886 = scmp.lt.s32.totalorder %s46, 1
        %s887 = scalar_select %p886, %s46, 1
        %s888 = smul.addr %s887, 8
        %s889 = smul.addr %s888, 4
        %s890 = scalar_lea.vmem %s11, %s889
        %p891 = scmp.lt.s32.totalorder %s46, 1
        %s892 = scalar_select %p891, %s46, 1
        %s893 = scalar_lea.vmem %s12, %s892
        %p894 = scmp.lt.s32.totalorder %s46, 1
        %s895 = scalar_select %p894, %s46, 1
        %s896 = scalar_lea.vmem %s14, %s895
        %p898 = scmp.eq.s32.totalorder %s46, 0
        // Predicated region
        $region113: #{tpu_custom_call.1} parent=87 // pred_check
          %p899 = pneg %p898
        $region114: #{tpu_custom_call.1} parent=87 // pred_check_branch
          %901 = sbr.rel (%p899) target = $region116
        $region115: #{tpu_custom_call.1} parent=87 // pred_region
          %v902 = vld [vmem:[%s710] sm:$0xff]
          %vm903 = vcmask 261120
          %904 = vst.msk [vmem:[#allocation2] sm:$0xff] %vm903, %v902
        $region116: #{tpu_custom_call.1} parent=87 // pred_fallthru
          _
        %v905 = vld [vmem:[#allocation2] sm:$0xff]
        %v906 = vld [vmem:[%s719] sm:$0x1]
        %v907 = vpack.c.bf16 %v905, %v905
        %v908 = vld [vmem:[%s863] sm:$0xf]
        %v909 = vld [vmem:[%s863 + $0x4] sm:$0xf]
        %v910 = vld [vmem:[%s863 + $0x8] sm:$0xf]
        %v911 = vld [vmem:[%s863 + $0xc] sm:$0xf]
        %v912 = vld [vmem:[%s866] sm:$0x1]
        %v914 = vperm.slane %v912, 0
        %v920 = vunpack.c.l.b16 %v908
        %v921 = vunpack.c.l.b16 %v909
        %v922 = vunpack.c.l.b16 %v910
        %v923 = vunpack.c.l.b16 %v911
        %v924 = vpack.c.b16 %v921, %v920
        %v925 = vpack.c.b16 %v923, %v922
        %vm928 = vcmask 261120
        %v930 = vsel %vm928, %v907, 0
        %932 = vmatpush.bf16.msra.mxu0 0
        %933 = vmatpush.bf16.msra.mxu0 0
        %934 = vmatpush.bf16.msra.mxu0 0
        %935 = vmatpush.bf16.msra.mxu0 0
        %936 = vmatpush.bf16.msra.mxu0 0
        %937 = vmatpush.bf16.msra.mxu0 0
        %938 = vmatpush.bf16.msra.mxu0 %v925
        %939 = vmatpush.bf16.msra.mxu0 %v924
        %940 = vmatmul.bf16.gmra.mxu0 %v930
        %v941 = vpop.f32.mrf.mxu0
        %v942 = vadd.f32 %v914, %v941
        %v943 = vpop.f32.mrf.mxu0
        %944 = vdwg.mxu0
        %946 = vrot.lane.b32.xlu0 %v942, 112
        %v947 = vpop.permute.xlu0 %946
        %949 = vrot.lane.b32.xlu0 %v942, 96
        %v950 = vpop.permute.xlu0 %949
        %952 = vrot.lane.b32.xlu0 %v942, 80
        %v953 = vpop.permute.xlu0 %952
        %955 = vrot.lane.b32.xlu0 %v942, 64
        %v956 = vpop.permute.xlu0 %955
        %958 = vrot.lane.b32.xlu0 %v942, 48
        %v959 = vpop.permute.xlu0 %958
        %v961 = vrot.slane %v950, 4
        %vm962 = vcmask 1047556
        %v963 = vsel %vm962, %v961, %v942
        %v964 = vrot.slane %v942, 4
        %v965 = vsel %vm962, %v950, %v964
        %v967 = vunpack.c.l.s4 1983009808
        %v968 = vunpack.c.0.s8 %v967
        %v969 = vperm.slane %v963, %v968
        %v971 = vunpack.c.l.s4 1983009808
        %v972 = vunpack.c.0.s8 %v971
        %v973 = vperm.slane %v965, %v972
        %v974 = vrot.slane %v953, 4
        %v975 = vsel %vm962, %v974, %v947
        %v976 = vrot.slane %v947, 4
        %v977 = vsel %vm962, %v953, %v976
        %v979 = vunpack.c.l.s4 1983009808
        %v980 = vunpack.c.0.s8 %v979
        %v981 = vperm.slane %v975, %v980
        %v983 = vunpack.c.l.s4 1983009808
        %v984 = vunpack.c.0.s8 %v983
        %v985 = vperm.slane %v977, %v984
        %v986 = vrot.slane %v956, 4
        %v987 = vsel %vm962, 0.0, %v986
        %v989 = vunpack.c.l.s4 1983009808
        %v990 = vunpack.c.0.s8 %v989
        %v991 = vperm.slane %v956, %v990
        %v993 = vunpack.c.l.s4 1983009808
        %v994 = vunpack.c.0.s8 %v993
        %v995 = vperm.slane %v987, %v994
        %v996 = vrot.slane %v959, 4
        %v997 = vsel %vm962, 0.0, %v996
        %v999 = vunpack.c.l.s4 1983009808
        %v1000 = vunpack.c.0.s8 %v999
        %v1001 = vperm.slane %v959, %v1000
        %v1003 = vunpack.c.l.s4 1983009808
        %v1004 = vunpack.c.0.s8 %v1003
        %v1005 = vperm.slane %v997, %v1004
        %v1006 = vrot.slane %v981, 4
        %v1007 = vsel %vm962, %v1006, %v969
        %v1008 = vrot.slane %v969, 4
        %v1009 = vsel %vm962, %v981, %v1008
        %v1011 = vunpack.c.l.s4 1934713408
        %v1012 = vunpack.c.0.s8 %v1011
        %v1013 = vperm.slane %v1007, %v1012
        %v1015 = vunpack.c.l.s4 1934713408
        %v1016 = vunpack.c.0.s8 %v1015
        %v1017 = vperm.slane %v1009, %v1016
        %v1018 = vrot.slane %v985, 4
        %v1019 = vsel %vm962, %v1018, %v973
        %v1020 = vrot.slane %v973, 4
        %v1021 = vsel %vm962, %v985, %v1020
        %v1023 = vunpack.c.l.s4 1934713408
        %v1024 = vunpack.c.0.s8 %v1023
        %v1025 = vperm.slane %v1019, %v1024
        %v1027 = vunpack.c.l.s4 1934713408
        %v1028 = vunpack.c.0.s8 %v1027
        %v1029 = vperm.slane %v1021, %v1028
        %v1030 = vrot.slane %v1001, 4
        %v1031 = vsel %vm962, %v1030, %v991
        %v1032 = vrot.slane %v991, 4
        %v1033 = vsel %vm962, %v1001, %v1032
        %v1035 = vunpack.c.l.s4 1934713408
        %v1036 = vunpack.c.0.s8 %v1035
        %v1037 = vperm.slane %v1031, %v1036
        %v1039 = vunpack.c.l.s4 1934713408
        %v1040 = vunpack.c.0.s8 %v1039
        %v1041 = vperm.slane %v1033, %v1040
        %v1042 = vrot.slane %v1005, 4
        %v1043 = vsel %vm962, %v1042, %v995
        %v1044 = vrot.slane %v995, 4
        %v1045 = vsel %vm962, %v1005, %v1044
        %v1047 = vunpack.c.l.s4 1934713408
        %v1048 = vunpack.c.0.s8 %v1047
        %v1049 = vperm.slane %v1043, %v1048
        %v1051 = vunpack.c.l.s4 1934713408
        %v1052 = vunpack.c.0.s8 %v1051
        %v1053 = vperm.slane %v1045, %v1052
        %v1054 = vrot.slane %v1037, 4
        %v1055 = vsel %vm962, %v1054, %v1013
        %v1056 = vrot.slane %v1013, 4
        %v1057 = vsel %vm962, %v1037, %v1056
        %v1058 = vrot.slane %v1041, 4
        %v1059 = vsel %vm962, %v1058, %v1017
        %v1060 = vrot.slane %v1017, 4
        %v1061 = vsel %vm962, %v1041, %v1060
        %v1062 = vrot.slane %v1049, 4
        %v1063 = vsel %vm962, %v1062, %v1025
        %v1064 = vrot.slane %v1025, 4
        %v1065 = vsel %vm962, %v1049, %v1064
        %v1066 = vrot.slane %v1053, 4
        %v1067 = vsel %vm962, %v1066, %v1029
        %v1068 = vrot.slane %v1029, 4
        %v1069 = vsel %vm962, %v1053, %v1068
        %v1070 = vrot.slane %v1059, 4
        %v1071 = vsel %vm962, %v1070, %v1055
        %v1072 = vrot.slane %v1055, 4
        %v1073 = vsel %vm962, %v1059, %v1072
        %v1075 = vunpack.c.l.s4 1983009808
        %v1076 = vunpack.c.0.s8 %v1075
        %v1077 = vperm.slane %v1071, %v1076
        %v1079 = vunpack.c.l.s4 1983009808
        %v1080 = vunpack.c.0.s8 %v1079
        %v1081 = vperm.slane %v1073, %v1080
        %v1082 = vrot.slane %v1061, 4
        %v1083 = vsel %vm962, %v1082, %v1057
        %v1084 = vrot.slane %v1057, 4
        %v1085 = vsel %vm962, %v1061, %v1084
        %v1087 = vunpack.c.l.s4 1983009808
        %v1088 = vunpack.c.0.s8 %v1087
        %v1089 = vperm.slane %v1083, %v1088
        %v1091 = vunpack.c.l.s4 1983009808
        %v1092 = vunpack.c.0.s8 %v1091
        %v1093 = vperm.slane %v1085, %v1092
        %v1094 = vrot.slane %v1067, 4
        %v1095 = vsel %vm962, %v1094, %v1063
        %v1096 = vrot.slane %v1063, 4
        %v1097 = vsel %vm962, %v1067, %v1096
        %v1099 = vunpack.c.l.s4 1983009808
        %v1100 = vunpack.c.0.s8 %v1099
        %v1101 = vperm.slane %v1095, %v1100
        %v1103 = vunpack.c.l.s4 1983009808
        %v1104 = vunpack.c.0.s8 %v1103
        %v1105 = vperm.slane %v1097, %v1104
        %v1106 = vrot.slane %v1069, 4
        %v1107 = vsel %vm962, %v1106, %v1065
        %v1108 = vrot.slane %v1065, 4
        %v1109 = vsel %vm962, %v1069, %v1108
        %v1111 = vunpack.c.l.s4 1983009808
        %v1112 = vunpack.c.0.s8 %v1111
        %v1113 = vperm.slane %v1107, %v1112
        %v1115 = vunpack.c.l.s4 1983009808
        %v1116 = vunpack.c.0.s8 %v1115
        %v1117 = vperm.slane %v1109, %v1116
        %v1118 = vrot.slane %v1089, 4
        %v1119 = vsel %vm962, %v1118, %v1077
        %v1120 = vrot.slane %v1077, 4
        %v1121 = vsel %vm962, %v1089, %v1120
        %v1123 = vunpack.c.l.s4 1934713408
        %v1124 = vunpack.c.0.s8 %v1123
        %v1125 = vperm.slane %v1119, %v1124
        %v1127 = vunpack.c.l.s4 1934713408
        %v1128 = vunpack.c.0.s8 %v1127
        %v1129 = vperm.slane %v1121, %v1128
        %v1130 = vrot.slane %v1093, 4
        %v1131 = vsel %vm962, %v1130, %v1081
        %v1133 = vunpack.c.l.s4 1934713408
        %v1134 = vunpack.c.0.s8 %v1133
        %v1135 = vperm.slane %v1131, %v1134
        %v1136 = vrot.slane %v1113, 4
        %v1137 = vsel %vm962, %v1136, %v1101
        %v1138 = vrot.slane %v1101, 4
        %v1139 = vsel %vm962, %v1113, %v1138
        %v1141 = vunpack.c.l.s4 1934713408
        %v1142 = vunpack.c.0.s8 %v1141
        %v1143 = vperm.slane %v1137, %v1142
        %v1145 = vunpack.c.l.s4 1934713408
        %v1146 = vunpack.c.0.s8 %v1145
        %v1147 = vperm.slane %v1139, %v1146
        %v1148 = vrot.slane %v1117, 4
        %v1149 = vsel %vm962, %v1148, %v1105
        %v1151 = vunpack.c.l.s4 1934713408
        %v1152 = vunpack.c.0.s8 %v1151
        %v1153 = vperm.slane %v1149, %v1152
        %v1154 = vrot.slane %v1143, 4
        %v1155 = vsel %vm962, %v1154, %v1125
        %v1156 = vrot.slane %v1125, 4
        %v1157 = vsel %vm962, %v1143, %v1156
        %v1158 = vrot.slane %v1147, 4
        %v1159 = vsel %vm962, %v1158, %v1129
        %v1160 = vrot.slane %v1129, 4
        %v1161 = vsel %vm962, %v1147, %v1160
        %v1162 = vrot.slane %v1153, 4
        %v1163 = vsel %vm962, %v1162, %v1135
        %v1164 = vrot.slane %v1135, 4
        %v1165 = vsel %vm962, %v1153, %v1164
        %v1166 = vpack.c.bf16 %v1155, %v1155
        %v1167 = vpack.c.bf16 %v1157, %v1157
        %v1168 = vpack.c.bf16 %v1159, %v1159
        %v1169 = vpack.c.bf16 %v1161, %v1161
        %v1170 = vpack.c.bf16 %v1163, %v1163
        %v1171 = vpack.c.bf16 %v1165, %v1165
        %vm1172 = vcmask 130048
        %v1174 = vsel %vm1172, %v1166, 0
        %v1177 = vsel %vm1172, %v1168, 0
        %1179 = vmatpush.bf16.xpose.msra.mxu0 0
        %1180 = vmatpush.bf16.xpose.msra.mxu0 0
        %1181 = vmatpush.bf16.xpose.msra.mxu0 0
        %1182 = vmatpush.bf16.xpose.msra.mxu0 0
        %1183 = vmatpush.bf16.xpose.msra.mxu0 0
        %1184 = vmatpush.bf16.xpose.msra.mxu0 0
        %1185 = vmatpush.bf16.xpose.msra.mxu0 0
        %1186 = vmatpush.bf16.xpose.msra.mxu0 %v1177
        %1187 = vmatmul.bf16.gmra.mxu0 %v1174
        %v1188 = vpop.f32.mrf.mxu0
        %v1189 = vadd.f32 0.0, %v1188
        %v1190 = vpop.f32.mrf.mxu0
        %1191 = vdwg.mxu0
        %v1193 = vsel %vm1172, %v1167, 0
        %v1196 = vsel %vm1172, %v1169, 0
        %1198 = vmatpush.bf16.xpose.msra.mxu0 0
        %1199 = vmatpush.bf16.xpose.msra.mxu0 0
        %1200 = vmatpush.bf16.xpose.msra.mxu0 0
        %1201 = vmatpush.bf16.xpose.msra.mxu0 0
        %1202 = vmatpush.bf16.xpose.msra.mxu0 0
        %1203 = vmatpush.bf16.xpose.msra.mxu0 0
        %1204 = vmatpush.bf16.xpose.msra.mxu0 0
        %1205 = vmatpush.bf16.xpose.msra.mxu0 %v1196
        %1206 = vmatmul.bf16.gmra.mxu0 %v1193
        %v1207 = vpop.f32.mrf.mxu0
        %v1208 = vadd.f32 0.0, %v1207
        %v1209 = vpop.f32.mrf.mxu0
        %1210 = vdwg.mxu0
        %v1211 = vmul.f32 %v1189, 0.25
        %v1212 = vmul.f32 %v1208, 0.25
        %v1214 = vperm.slane %v906, 0
        %v1216 = vadd.f32 %v1211, %v1214
        %v1217 = vadd.f32 %v1212, %v1214
        %vm1218 = vcmask 64512
        %v1219 = vsel %vm1218, %v1216, -inf
        %1220 = vmax.xlane.f32.xlu0 %v1219
        %v1221 = vpop.xlane.xlu0 %1220
        %v1222 = vsel %vm1218, %v1217, -inf
        %1223 = vmax.xlane.f32.xlu0 %v1222
        %v1224 = vpop.xlane.xlu0 %1223
        %v1225 = vsub.f32 %v1216, %v1221
        %v1226 = vsub.f32 %v1217, %v1224
        %v1227 = vmul.f32 %v1225, 1.442695
        %v1228 = vpow.pop %v1227
        %v1229 = vmul.f32 %v1226, 1.442695
        %v1230 = vpow.pop %v1229
        %v1231 = vsel %vm1218, %v1228, 0.0
        %1232 = vadd.xlane.f32.xlu0 %v1231
        %v1233 = vpop.xlane.xlu0 %1232
        %v1234 = vsel %vm1218, %v1230, 0.0
        %1235 = vadd.xlane.f32.xlu0 %v1234
        %v1236 = vpop.xlane.xlu0 %1235
        %v1237 = vrcp.pop %v1233
        %v1238 = vrcp.pop %v1236
        %v1239 = vmul.f32 %v1228, %v1237
        %v1240 = vmul.f32 %v1230, %v1238
        %v1241 = vpack.c.bf16 %v1239, %v1239
        %v1242 = vpack.c.bf16 %v1240, %v1240
        %v1244 = vsel %vm1218, %v1241, 0
        %vm1246 = vcmask 1043456
        %v1248 = vsel %vm1246, %v1170, 0
        %1250 = vmatpush.bf16.msra.mxu0 0
        %1251 = vmatpush.bf16.msra.mxu0 0
        %1252 = vmatpush.bf16.msra.mxu0 0
        %1253 = vmatpush.bf16.msra.mxu0 0
        %1254 = vmatpush.bf16.msra.mxu0 0
        %1255 = vmatpush.bf16.msra.mxu0 0
        %1256 = vmatpush.bf16.msra.mxu0 0
        %1257 = vmatpush.bf16.msra.mxu0 %v1248
        %1258 = vmatmul.bf16.gmra.mxu0 %v1244
        %v1259 = vpop.f32.mrf.mxu0
        %v1260 = vadd.f32 0.0, %v1259
        %v1261 = vpop.f32.mrf.mxu0
        %1262 = vdwg.mxu0
        %v1264 = vsel %vm1218, %v1242, 0
        %v1267 = vsel %vm1246, %v1171, 0
        %1269 = vmatpush.bf16.msra.mxu0 0
        %1270 = vmatpush.bf16.msra.mxu0 0
        %1271 = vmatpush.bf16.msra.mxu0 0
        %1272 = vmatpush.bf16.msra.mxu0 0
        %1273 = vmatpush.bf16.msra.mxu0 0
        %1274 = vmatpush.bf16.msra.mxu0 0
        %1275 = vmatpush.bf16.msra.mxu0 0
        %1276 = vmatpush.bf16.msra.mxu0 %v1267
        %1277 = vmatmul.bf16.gmra.mxu0 %v1264
        %v1278 = vpop.f32.mrf.mxu0
        %v1279 = vadd.f32 0.0, %v1278
        %v1280 = vpop.f32.mrf.mxu0
        %1281 = vdwg.mxu0
        %v1282 = vrot.slane %v1260, 4
        %v1283 = vsel %vm962, 0.0, %v1282
        %v1285 = vunpack.c.l.s4 1983009808
        %v1286 = vunpack.c.0.s8 %v1285
        %v1287 = vperm.slane %v1260, %v1286
        %v1289 = vunpack.c.l.s4 1983009808
        %v1290 = vunpack.c.0.s8 %v1289
        %v1291 = vperm.slane %v1283, %v1290
        %v1292 = vrot.slane %v1279, 4
        %v1293 = vsel %vm962, 0.0, %v1292
        %v1295 = vunpack.c.l.s4 1983009808
        %v1296 = vunpack.c.0.s8 %v1295
        %v1297 = vperm.slane %v1279, %v1296
        %v1299 = vunpack.c.l.s4 1983009808
        %v1300 = vunpack.c.0.s8 %v1299
        %v1301 = vperm.slane %v1293, %v1300
        %v1302 = vrot.slane %v1297, 4
        %v1303 = vsel %vm962, %v1302, %v1287
        %v1304 = vrot.slane %v1287, 4
        %v1305 = vsel %vm962, %v1297, %v1304
        %v1307 = vunpack.c.l.s4 1934713408
        %v1308 = vunpack.c.0.s8 %v1307
        %v1309 = vperm.slane %v1303, %v1308
        %v1311 = vunpack.c.l.s4 1934713408
        %v1312 = vunpack.c.0.s8 %v1311
        %v1313 = vperm.slane %v1305, %v1312
        %v1314 = vrot.slane %v1301, 4
        %v1315 = vsel %vm962, %v1314, %v1291
        %v1316 = vrot.slane %v1291, 4
        %v1317 = vsel %vm962, %v1301, %v1316
        %v1319 = vunpack.c.l.s4 1934713408
        %v1320 = vunpack.c.0.s8 %v1319
        %v1321 = vperm.slane %v1315, %v1320
        %v1323 = vunpack.c.l.s4 1934713408
        %v1324 = vunpack.c.0.s8 %v1323
        %v1325 = vperm.slane %v1317, %v1324
        %v1326 = vrot.slane %v1309, 4
        %v1327 = vsel %vm962, 0.0, %v1326
        %v1328 = vrot.slane %v1313, 4
        %v1329 = vsel %vm962, 0.0, %v1328
        %v1330 = vrot.slane %v1321, 4
        %v1331 = vsel %vm962, 0.0, %v1330
        %v1332 = vrot.slane %v1325, 4
        %v1333 = vsel %vm962, 0.0, %v1332
        %v1334 = vsel %vm962, %v1328, %v1309
        %v1336 = vunpack.c.l.s4 1983009808
        %v1337 = vunpack.c.0.s8 %v1336
        %v1338 = vperm.slane %v1334, %v1337
        %v1339 = vrot.slane %v1329, 4
        %v1340 = vsel %vm962, %v1339, %v1327
        %v1342 = vunpack.c.l.s4 1983009808
        %v1343 = vunpack.c.0.s8 %v1342
        %v1344 = vperm.slane %v1340, %v1343
        %v1345 = vsel %vm962, %v1332, %v1321
        %v1347 = vunpack.c.l.s4 1983009808
        %v1348 = vunpack.c.0.s8 %v1347
        %v1349 = vperm.slane %v1345, %v1348
        %v1350 = vrot.slane %v1333, 4
        %v1351 = vsel %vm962, %v1350, %v1331
        %v1353 = vunpack.c.l.s4 1983009808
        %v1354 = vunpack.c.0.s8 %v1353
        %v1355 = vperm.slane %v1351, %v1354
        %v1356 = vrot.slane %v1344, 4
        %v1357 = vsel %vm962, %v1356, %v1338
        %v1359 = vunpack.c.l.s4 1934713408
        %v1360 = vunpack.c.0.s8 %v1359
        %v1361 = vperm.slane %v1357, %v1360
        %v1362 = vrot.slane %v1355, 4
        %v1363 = vsel %vm962, %v1362, %v1349
        %v1365 = vunpack.c.l.s4 1934713408
        %v1366 = vunpack.c.0.s8 %v1365
        %v1367 = vperm.slane %v1363, %v1366
        %v1368 = vrot.slane %v1367, 4
        %v1369 = vsel %vm962, %v1368, %v1361
        %v1370 = vrot.slane %v1361, 4
        %v1371 = vsel %vm962, %v1367, %v1370
        %1373 = vrot.lane.b32.xlu0 %v1371, 16
        %v1374 = vpop.permute.xlu0 %1373
        %v1376 = vsel %vm1172, %v1369, %v1374
        %v1377 = vpack.c.bf16 %v1376, %v1376
        %v1378 = vld [vmem:[%s871] sm:$0xf]
        %v1379 = vld [vmem:[%s871 + $0x4] sm:$0xf]
        %v1380 = vld [vmem:[%s871 + $0x8] sm:$0xf]
        %v1381 = vld [vmem:[%s871 + $0xc] sm:$0xf]
        %v1382 = vld [vmem:[%s874] sm:$0x1]
        %v1384 = vperm.slane %v1382, 0
        %v1390 = vunpack.c.l.b16 %v1378
        %v1391 = vunpack.c.l.b16 %v1379
        %v1392 = vunpack.c.l.b16 %v1380
        %v1393 = vunpack.c.l.b16 %v1381
        %v1394 = vpack.c.b16 %v1391, %v1390
        %v1395 = vpack.c.b16 %v1393, %v1392
        %v1399 = vsel %vm928, %v1377, 0
        %1401 = vmatpush.bf16.msra.mxu0 0
        %1402 = vmatpush.bf16.msra.mxu0 0
        %1403 = vmatpush.bf16.msra.mxu0 0
        %1404 = vmatpush.bf16.msra.mxu0 0
        %1405 = vmatpush.bf16.msra.mxu0 0
        %1406 = vmatpush.bf16.msra.mxu0 0
        %1407 = vmatpush.bf16.msra.mxu0 %v1395
        %1408 = vmatpush.bf16.msra.mxu0 %v1394
        %1409 = vmatmul.bf16.gmra.mxu0 %v1399
        %v1410 = vpop.f32.mrf.mxu0
        %v1411 = vadd.f32 %v1384, %v1410
        %v1412 = vpop.f32.mrf.mxu0
        %1413 = vdwg.mxu0
        %v1414 = vadd.f32 %v1411, %v905
        %v1415 = vld [vmem:[%s738] sm:$0x1]
        %v1416 = vld [vmem:[%s877] sm:$0x1]
        %v1417 = vsel %vm928, %v1414, 0.0
        %1418 = vadd.xlane.f32.xlu0 %v1417
        %v1419 = vpop.xlane.xlu0 %1418
        %v1420 = vrcp.pop 32.0
        %v1421 = vmul.f32 32.0, %v1420
        %v1422 = vsub.f32 1.0, %v1421
        %v1423 = vmul.f32 %v1420, %v1422
        %v1424 = vadd.f32 %v1420, %v1423
        %vm1425 = vweird.f32 %v1420
        %v1426 = vsel %vm1425, %v1420, %v1424
        %v1427 = vmul.f32 %v1419, %v1426
        %v1428 = vsub.f32 %v1414, %v1427
        %v1429 = vmul.f32 %v1428, %v1428
        %v1430 = vsel %vm928, %v1429, 0.0
        %1431 = vadd.xlane.f32.xlu0 %v1430
        %v1432 = vpop.xlane.xlu0 %1431
        %v1433 = vmul.f32 %v1432, %v1426
        %v1434 = vadd.f32 %v1433, 1e-12
        %v1435 = vrsqrt.pop %v1434
        %v1436 = vmul.f32 %v1435, %v1434
        %v1437 = vmul.f32 %v1436, %v1435
        %v1438 = vmul.f32 0.5, %v1437
        %v1439 = vsub.f32 1.5, %v1438
        %v1440 = vmul.f32 %v1435, %v1439
        %vm1441 = vweird.f32 %v1434
        %vm1442 = vweird.f32 %v1435
        %vm1443 = vmor %vm1441, %vm1442
        %v1444 = vsel %vm1443, %v1435, %v1440
        %v1445 = vmul.f32 %v1428, %v1444
        %v1447 = vperm.slane %v1415, 0
        %v1449 = vmul.f32 %v1445, %v1447
        %v1451 = vperm.slane %v1416, 0
        %v1453 = vadd.f32 %v1449, %v1451
        %v1454 = vpack.c.bf16 %v1453, %v1453
        %v1455 = vld [vmem:[%s882] sm:$0xf]
        %v1456 = vld [vmem:[%s882 + $0x4] sm:$0xf]
        %v1457 = vld [vmem:[%s882 + $0x8] sm:$0xf]
        %v1458 = vld [vmem:[%s882 + $0xc] sm:$0xf]
        %v1459 = vld [vmem:[%s885] sm:$0x1]
        %v1461 = vperm.slane %v1459, 0
        %v1467 = vunpack.c.l.b16 %v1455
        %v1468 = vunpack.c.l.b16 %v1456
        %v1469 = vunpack.c.l.b16 %v1457
        %v1470 = vunpack.c.l.b16 %v1458
        %v1471 = vpack.c.b16 %v1468, %v1467
        %v1472 = vpack.c.b16 %v1470, %v1469
        %v1476 = vsel %vm928, %v1454, 0
        %1478 = vmatpush.bf16.msra.mxu0 0
        %1479 = vmatpush.bf16.msra.mxu0 0
        %1480 = vmatpush.bf16.msra.mxu0 0
        %1481 = vmatpush.bf16.msra.mxu0 0
        %1482 = vmatpush.bf16.msra.mxu0 0
        %1483 = vmatpush.bf16.msra.mxu0 0
        %1484 = vmatpush.bf16.msra.mxu0 %v1472
        %1485 = vmatpush.bf16.msra.mxu0 %v1471
        %1486 = vmatmul.bf16.gmra.mxu0 %v1476
        %v1487 = vpop.f32.mrf.mxu0
        %v1488 = vadd.f32 %v1461, %v1487
        %v1489 = vpop.f32.mrf.mxu0
        %1490 = vdwg.mxu0
        %v1491 = vmul.f32 %v1488, %v1488
        %v1492 = vmul.f32 %v1488, %v1491
        %v1493 = vmul.f32 %v1492, 0.044715
        %v1494 = vadd.f32 %v1488, %v1493
        %v1495 = vmul.f32 %v1494, 0.7978846
        %v1496 = vtanh.pop %v1495
        %v1497 = vadd.f32 %v1496, 1.0
        %v1498 = vmul.f32 %v1497, 0.5
        %v1499 = vmul.f32 %v1488, %v1498
        %v1500 = vpack.c.bf16 %v1499, %v1499
        %v1501 = vld [vmem:[%s890] sm:$0xf]
        %v1502 = vld [vmem:[%s890 + $0x4] sm:$0xf]
        %v1503 = vld [vmem:[%s890 + $0x8] sm:$0xf]
        %v1504 = vld [vmem:[%s890 + $0xc] sm:$0xf]
        %v1505 = vld [vmem:[%s890 + $0x10] sm:$0xf]
        %v1506 = vld [vmem:[%s890 + $0x14] sm:$0xf]
        %v1507 = vld [vmem:[%s890 + $0x18] sm:$0xf]
        %v1508 = vld [vmem:[%s890 + $0x1c] sm:$0xf]
        %v1509 = vld [vmem:[%s893] sm:$0x1]
        %v1511 = vperm.slane %v1509, 0
        %v1521 = vunpack.c.l.b16 %v1501
        %v1522 = vunpack.c.l.b16 %v1502
        %v1523 = vunpack.c.l.b16 %v1503
        %v1524 = vunpack.c.l.b16 %v1504
        %v1525 = vunpack.c.l.b16 %v1505
        %v1526 = vunpack.c.l.b16 %v1506
        %v1527 = vunpack.c.l.b16 %v1507
        %v1528 = vunpack.c.l.b16 %v1508
        %v1529 = vpack.c.b16 %v1522, %v1521
        %v1530 = vpack.c.b16 %v1524, %v1523
        %v1531 = vpack.c.b16 %v1526, %v1525
        %v1532 = vpack.c.b16 %v1528, %v1527
        %vm1537 = vcmask 523264
        %v1539 = vsel %vm1537, %v1500, 0
        %1541 = vmatpush.bf16.msra.mxu0 0
        %1542 = vmatpush.bf16.msra.mxu0 0
        %1543 = vmatpush.bf16.msra.mxu0 0
        %1544 = vmatpush.bf16.msra.mxu0 0
        %1545 = vmatpush.bf16.msra.mxu0 %v1532
        %1546 = vmatpush.bf16.msra.mxu0 %v1531
        %1547 = vmatpush.bf16.msra.mxu0 %v1530
        %1548 = vmatpush.bf16.msra.mxu0 %v1529
        %1549 = vmatmul.bf16.gmra.mxu0 %v1539
        %v1550 = vpop.f32.mrf.mxu0
        %v1551 = vadd.f32 %v1511, %v1550
        %v1552 = vpop.f32.mrf.mxu0
        %1553 = vdwg.mxu0
        %v1554 = vadd.f32 %v1551, %v1453
        %v1555 = vld [vmem:[%s747] sm:$0x1]
        %v1556 = vld [vmem:[%s896] sm:$0x1]
        %v1557 = vsel %vm928, %v1554, 0.0
        %1558 = vadd.xlane.f32.xlu0 %v1557
        %v1559 = vpop.xlane.xlu0 %1558
        %v1560 = vmul.f32 %v1559, %v1426
        %v1561 = vsub.f32 %v1554, %v1560
        %v1562 = vmul.f32 %v1561, %v1561
        %v1563 = vsel %vm928, %v1562, 0.0
        %1564 = vadd.xlane.f32.xlu0 %v1563
        %v1565 = vpop.xlane.xlu0 %1564
        %v1566 = vmul.f32 %v1565, %v1426
        %v1567 = vadd.f32 %v1566, 1e-12
        %v1568 = vrsqrt.pop %v1567
        %v1569 = vmul.f32 %v1568, %v1567
        %v1570 = vmul.f32 %v1569, %v1568
        %v1571 = vmul.f32 0.5, %v1570
        %v1572 = vsub.f32 1.5, %v1571
        %v1573 = vmul.f32 %v1568, %v1572
        %vm1574 = vweird.f32 %v1567
        %vm1575 = vweird.f32 %v1568
        %vm1576 = vmor %vm1574, %vm1575
        %v1577 = vsel %vm1576, %v1568, %v1573
        %v1578 = vmul.f32 %v1561, %v1577
        %v1580 = vperm.slane %v1555, 0
        %v1582 = vmul.f32 %v1578, %v1580
        %v1584 = vperm.slane %v1556, 0
        %v1586 = vadd.f32 %v1582, %v1584
        %1587 = vst.msk [vmem:[#allocation2] sm:$0xff] %vm928, %v1586
        %p1588 = scmp.eq.s32.totalorder %s46, 1
        // Predicated region
        $region117: #{tpu_custom_call.1} parent=87 // pred_check
          %p1589 = pneg %p1588
        $region118: #{tpu_custom_call.1} parent=87 // pred_check_branch
          %1591 = sbr.rel (%p1589) target = $region120
        $region119: #{tpu_custom_call.1} parent=87 // pred_region
          %v1592 = vld [vmem:[#allocation2] sm:$0xff]
          %v1593 = vld [vmem:[%s729] sm:$0xff]
          %v1595 = vsel %vm1218, %v1593, 0
          %1597 = vmatpush.msra.mxu0 0.0
          %1598 = vmatpush.msra.mxu0 0.0
          %1599 = vmatpush.msra.mxu0 0.0
          %1600 = vmatpush.msra.mxu0 0.0
          %1601 = vmatpush.msra.mxu0 0.0
          %1602 = vmatpush.msra.mxu0 0.0
          %1603 = vmatpush.msra.mxu0 0.0
          %1604 = vmatpush.msra.mxu0 0.0
          %1605 = vmatpush.msra.mxu0 0.0
          %1606 = vmatpush.msra.mxu0 0.0
          %1607 = vmatpush.msra.mxu0 0.0
          %1608 = vmatpush.msra.mxu0 0.0
          %1609 = vmatpush.msra.mxu0 0.0
          %1610 = vmatpush.msra.mxu0 0.0
          %1611 = vmatpush.msra.mxu0 0.0
          %1612 = vmatpush.msra.mxu0 %v1592
          %1613 = vmatmul.f32.gmra.mxu0 %v1595
          %v1614 = vpop.f32.mrf.mxu0
          %v1615 = vadd.f32 0.0, %v1614
          %1616 = vdwg.mxu0
          %v1617 = vpack.c.bf16 %v1615, %v1615
          %v1618 = vld [vmem:[#allocation12] sm:$0xf]
          %v1619 = vld [vmem:[#allocation12 + $0x4] sm:$0xf]
          %v1620 = vld [vmem:[#allocation12 + $0x8] sm:$0xf]
          %v1621 = vld [vmem:[#allocation12 + $0xc] sm:$0xf]
          %v1622 = vld [vmem:[%s16] sm:$0x1]
          %v1624 = vperm.slane %v1622, 0
          %v1630 = vunpack.c.l.b16 %v1618
          %v1631 = vunpack.c.l.b16 %v1619
          %v1632 = vunpack.c.l.b16 %v1620
          %v1633 = vunpack.c.l.b16 %v1621
          %v1634 = vpack.c.b16 %v1631, %v1630
          %v1635 = vpack.c.b16 %v1633, %v1632
          %v1639 = vsel %vm928, %v1617, 0
          %1641 = vmatpush.bf16.msra.mxu0 0
          %1642 = vmatpush.bf16.msra.mxu0 0
          %1643 = vmatpush.bf16.msra.mxu0 0
          %1644 = vmatpush.bf16.msra.mxu0 0
          %1645 = vmatpush.bf16.msra.mxu0 0
          %1646 = vmatpush.bf16.msra.mxu0 0
          %1647 = vmatpush.bf16.msra.mxu0 %v1635
          %1648 = vmatpush.bf16.msra.mxu0 %v1634
          %1649 = vmatmul.bf16.gmra.mxu0 %v1639
          %v1650 = vpop.f32.mrf.mxu0
          %v1651 = vadd.f32 %v1624, %v1650
          %v1652 = vpop.f32.mrf.mxu0
          %1653 = vdwg.mxu0
          %1654 = vst [vmem:[%s858] sm:$0xff] %v1651
        $region120: #{tpu_custom_call.1} parent=87 // pred_fallthru
          _
        %s1655 = sand.u32 %s493, 1
        %s1656 = scalar_lea.sflag [#allocation5], %s1655
        %s1657 = sand.u32 %s493, 1
        %s1658 = smul.addr %s1657, 8
        %s1659 = scalar_lea.vmem [#allocation14], %s1658
        // Predicated region
        $region121: #{tpu_custom_call.1} parent=87 // pred_check
          %p1660 = pneg %p503
        $region122: #{tpu_custom_call.1} parent=87 // pred_check_branch
          %1662 = sbr.rel (%p1660) target = $region124
        $region123: #{tpu_custom_call.1} parent=87 // pred_region
          %1664 = vsyncadd %s1656, 0
          %s1665 = smul.addr %s45, 8
          %s1666 = scalar_lea.hbm %s17, %s1665
          %s1668 = sshll.u32 %s1659, 4
          %s1669 = int_to_ptr.vmem [resolvable:$true] %s1668
          %s1670 = sshll.u32 %s1666, 4
          %s1671 = int_to_ptr.hbm [resolvable:$true] %s1670
          %1673 = dma.vmem_to_hbm [thread:$0]  %s1669, 128, %s1671, %s1656
        $region124: #{tpu_custom_call.1} parent=87 // pred_fallthru
          _
      $region88: #{tpu_custom_call.1} parent=5 // pred_fallthru
        _
      %p1674 = scmp.le.s32.totalorder 2, %s36
      // Predicated region
      $region125: #{tpu_custom_call.1} parent=5 // pred_check
        %p1675 = pneg %p1674
      $region126: #{tpu_custom_call.1} parent=5 // pred_check_branch
        %1677 = sbr.rel (%p1675) target = $region128
      $region127: #{tpu_custom_call.1} parent=5 // pred_region
        %s1678 = ssub.s32 %s36, 2
        // Predicated region
        $region129: #{tpu_custom_call.1} parent=127 // pred_check
          %p1679 = pneg %p509
        $region130: #{tpu_custom_call.1} parent=127 // pred_check_branch
          %1681 = sbr.rel (%p1679) target = $region132
        $region131: #{tpu_custom_call.1} parent=127 // pred_region
          %s1682 = sand.u32 %s494, 1
          %s1683 = scalar_lea.sflag [#allocation5], %s1682
          %s1684 = sand.u32 %s494, 1
          %s1685 = smul.addr %s1684, 8
          %s1686 = scalar_lea.vmem [#allocation14], %s1685
          %1688 = dma.done %s1683, 128
        $region132: #{tpu_custom_call.1} parent=127 // pred_fallthru
          _
      $region128: #{tpu_custom_call.1} parent=5 // pred_fallthru
        _
    $region6: #{tpu_custom_call.1} parent=1 // loop_footer
      %s40 = sadd.s32 1, %s36
    $region7: #{tpu_custom_call.1} parent=1 // loop_footer_branch
      %35 = sbr.rel target = $region3
    $region8: #{tpu_custom_call.1} parent=1 // loop_exit
      _
    %1689 = vsyncpa [#allocation4], 1
    %s1690 = scalar_lea.sflag [#allocation4], 1
    %1691 = vsyncpa %s1690, 1
    %1692 = vsyncpa [#allocation7], 1
    %s1693 = scalar_lea.sflag [#allocation7], 1
    %1694 = vsyncpa %s1693, 1
    %1695 = vsyncpa [#allocation10], 1
    %s1696 = scalar_lea.sflag [#allocation10], 1
    %1697 = vsyncpa %s1696, 1
    %1698 = vsyncpa [#allocation13], 1
    %1699 = vsyncpa [#allocation5], 1
    %s1700 = scalar_lea.sflag [#allocation5], 1
    %1701 = vsyncpa %s1700, 1

</llo_original>
